<compile_context>
chip_gen: v5e
topology: v5e:2x2
jax: 0.10.0
libtpu: 0.0.40
codegen_flags: <defaults>
</compile_context>

<pallas_src>
import jax
import jax.numpy as jnp
from jax import lax
from jax.experimental import pallas as pl
from jax.experimental.pallas import tpu as pltpu


def gnn_layer_kernel(send_col_ref, recv_col_ref, recv_row_ref, x_ref, ea_ref,
                     w1a_ref, w1b_ref, w1c_ref, b1_ref,
                     w2_ref, b2_ref,
                     wres_ref, bres_ref,
                     wu1_ref, bu1_ref, wu2_ref, bu2_ref,
                     x_out_ref, msg_out_ref):
    f32 = jnp.float32
    bf16 = jnp.bfloat16
    N = x_out_ref.shape[0]
    E = msg_out_ref.shape[0]

    x = x_ref[...]                         # [N, I] f32
    ea = ea_ref[...]                       # [E, F] f32
    send_col = send_col_ref[...]           # [E, 1] int32
    recv_col = recv_col_ref[...]           # [E, 1] int32
    recv_row = recv_row_ref[...]           # [1, E] int32

    # Gather one-hots built directly in the MXU-friendly [E, N] orientation (no in-kernel
    # transpose); 0/1 entries are exact in bf16, accumulation stays f32.
    iota_en = lax.broadcasted_iota(jnp.int32, (E, N), 1)
    send_oh = (iota_en == send_col).astype(bf16)       # [E, N]
    recv_oh = (iota_en == recv_col).astype(bf16)       # [E, N]

    # Scatter one-hot built directly in [N, E] orientation (not transposed from the above).
    iota_ne = lax.broadcasted_iota(jnp.int32, (N, E), 0)
    recv_oh_t = (iota_ne == recv_row).astype(f32)      # [N, E]

    # --- message MLP front-end: project-then-gather -------------------------------------
    xb = x.astype(bf16)
    xa_p = jnp.dot(xb, w1a_ref[...], preferred_element_type=f32)                # [N, Hp]
    xb_p = jnp.dot(xb, w1b_ref[...], preferred_element_type=f32)                # [N, Hp]
    ec = jnp.dot(ea.astype(bf16), w1c_ref[...], preferred_element_type=f32)     # [E, Hp]

    h1 = (jnp.dot(send_oh, xa_p.astype(bf16), preferred_element_type=f32)
          + jnp.dot(recv_oh, xb_p.astype(bf16), preferred_element_type=f32)
          + ec + b1_ref[...])
    h1 = h1 * jax.nn.sigmoid(h1)                                                # SiLU (f32)
    msg = jnp.dot(h1.astype(bf16), w2_ref[...], preferred_element_type=f32) + b2_ref[...]
    msg = msg * jax.nn.sigmoid(msg)                                             # SiLU (f32)
    msg_out_ref[...] = msg                                                      # [E, Hp] lane-dense

    # --- scatter-mean over recv (empty segments -> 0, as torch_scatter) -----------------
    aggr_sum = jnp.dot(recv_oh_t.astype(bf16), msg.astype(bf16),
                       preferred_element_type=f32)                              # [N, Hp]
    counts = jnp.sum(recv_oh_t, axis=1, keepdims=True)                          # [N, 1] exact
    inv = pl.reciprocal(jnp.maximum(counts, 1.0), approx=True)                  # EUP slot
    aggr = jnp.where(counts > 0, aggr_sum * inv, 0.0)

    # --- residual projection + update MLP ------------------------------------------------
    xh = jnp.dot(xb, wres_ref[...], preferred_element_type=f32) + bres_ref[...] + aggr
    u1 = jnp.dot(xh.astype(bf16), wu1_ref[...], preferred_element_type=f32) + bu1_ref[...]
    u1 = u1 * jax.nn.sigmoid(u1)
    u2 = jnp.dot(u1.astype(bf16), wu2_ref[...], preferred_element_type=f32) + bu2_ref[...]

    x_out_ref[...] = xh + u2                                                    # [N, Hp] lane-dense


def gnn_layer(x, edge_attr, send, recv, params, *, lane=128):
    """x: [B, N, I], edge_attr: [B, E, F]; same edge structure (send/recv) for every graph."""
    B, N, I = x.shape
    _, E, F = edge_attr.shape
    H = params["w2"].shape[1]
    U = params["wu1"].shape[1]
    Hp = pl.cdiv(H, lane) * lane
    Up = pl.cdiv(U, lane) * lane
    f32, bf16 = jnp.float32, jnp.bfloat16

    def pad2(a, r, c, dtype):
        a = jnp.pad(a, ((0, r - a.shape[0]), (0, c - a.shape[1])))
        return a.astype(dtype)

    # Zero-pad hidden dims to a lane multiple (padded channels stay exactly 0 through SiLU),
    # cast weights to bf16 once here (MXU operands), keep biases f32.
    w1a = pad2(params["w1a"], I, Hp, bf16)
    w1b = pad2(params["w1b"], I, Hp, bf16)
    w1c = pad2(params["w1c"], F, Hp, bf16)
    b1 = pad2(params["b1"], 1, Hp, f32)
    w2 = pad2(params["w2"], Hp, Hp, bf16)
    b2 = pad2(params["b2"], 1, Hp, f32)
    wres = pad2(params["wres"], I, Hp, bf16)
    bres = pad2(params["bres"], 1, Hp, f32)
    wu1 = pad2(params["wu1"], Hp, Up, bf16)
    bu1 = pad2(params["bu1"], 1, Up, f32)
    wu2 = pad2(params["wu2"], Up, Hp, bf16)
    bu2 = pad2(params["bu2"], 1, Hp, f32)

    send_col = send.reshape(E, 1).astype(jnp.int32)
    recv_col = recv.reshape(E, 1).astype(jnp.int32)
    recv_row = recv.reshape(1, E).astype(jnp.int32)

    ins = [send_col, recv_col, recv_row,
           x.astype(f32), edge_attr.astype(f32),
           w1a, w1b, w1c, b1, w2, b2, wres, bres, wu1, bu1, wu2, bu2]

    def shared(shape):
        return pl.BlockSpec(shape, lambda b: (0,) * len(shape))

    in_specs = [
        shared((E, 1)), shared((E, 1)), shared((1, E)),
        pl.BlockSpec((None, N, I), lambda b: (b, 0, 0)),
        pl.BlockSpec((None, E, F), lambda b: (b, 0, 0)),
        shared(w1a.shape), shared(w1b.shape), shared(w1c.shape), shared(b1.shape),
        shared(w2.shape), shared(b2.shape),
        shared(wres.shape), shared(bres.shape),
        shared(wu1.shape), shared(bu1.shape), shared(wu2.shape), shared(bu2.shape),
    ]
    out_specs = (pl.BlockSpec((None, N, Hp), lambda b: (b, 0, 0)),
                 pl.BlockSpec((None, E, Hp), lambda b: (b, 0, 0)))

    x_out, msg_out = pl.pallas_call(
        gnn_layer_kernel,
        grid=(B,),
        in_specs=in_specs,
        out_specs=out_specs,
        out_shape=(jax.ShapeDtypeStruct((B, N, Hp), f32),
                   jax.ShapeDtypeStruct((B, E, Hp), f32)),
        compiler_params=pltpu.CompilerParams(
            dimension_semantics=("parallel",),
            vmem_limit_bytes=32 * 1024 * 1024),
    )(*ins)

    # Slice padded hidden channels back off (they are exactly zero).
    return x_out[..., :H], msg_out[..., :H]


def gnn_layer_ref(x, edge_attr, send, recv, p):
    """Pure-JAX f32 reference for one graph, mirroring the PyTorch forward (only_edge_attr=False)."""
    N = x.shape[0]
    silu = jax.nn.silu
    e_in = jnp.concatenate([x[send], x[recv], edge_attr], axis=-1)
    W1 = jnp.concatenate([p["w1a"], p["w1b"], p["w1c"]], axis=0)
    h1 = silu(e_in @ W1 + p["b1"])
    msg = silu(h1 @ p["w2"] + p["b2"])
    aggr_sum = jax.ops.segment_sum(msg, recv, num_segments=N)
    counts = jax.ops.segment_sum(jnp.ones((msg.shape[0],), jnp.float32), recv, num_segments=N)
    aggr = jnp.where(counts[:, None] > 0, aggr_sum / jnp.maximum(counts, 1.0)[:, None], 0.0)
    xh = x @ p["wres"] + p["bres"] + aggr
    out = xh + (silu(xh @ p["wu1"] + p["bu1"]) @ p["wu2"] + p["bu2"])
    return out, msg


if __name__ == "__main__":
    # Small shapes consistent with the module: batch of graphs/timesteps, fully connected graph.
    B = 4           # graphs per call (batched grid axis)
    N = 8           # num nodes per graph (batch*num_objects flattened per graph)
    I = 16          # input_size
    H = 32          # hidden_size
    F = 3 * H - 2 * I   # edge feature dim so that cat([x_s, x_r, e]) has 3*H features

    send_np, recv_np = [], []
    for s in range(N):
        for r in range(N):
            if s != r:
                send_np.append(s)
                recv_np.append(r)
    send = jnp.asarray(send_np, jnp.int32)
    recv = jnp.asarray(recv_np, jnp.int32)
    E = send.shape[0]

    key = jax.random.PRNGKey(0)
    ks = jax.random.split(key, 16)

    def lin(kw, kb, fan_in, fan_out):
        bound = 1.0 / jnp.sqrt(fan_in)
        w = jax.random.uniform(kw, (fan_in, fan_out), jnp.float32, -bound, bound)
        b = jax.random.uniform(kb, (1, fan_out), jnp.float32, -bound, bound)
        return w, b

    W1, b1 = lin(ks[0], ks[1], 3 * H, H)      # message_fn[0]
    W2, b2 = lin(ks[2], ks[3], H, H)          # message_fn[2]
    Wres, bres = lin(ks[4], ks[5], I, H)      # res (Linear since I != H)
    Wu1, bu1 = lin(ks[6], ks[7], H, 2 * H)    # update_fn[0]
    Wu2, bu2 = lin(ks[8], ks[9], 2 * H, H)    # update_fn[2]

    params = dict(
        w1a=W1[:I], w1b=W1[I:2 * I], w1c=W1[2 * I:], b1=b1,
        w2=W2, b2=b2,
        wres=Wres, bres=bres,
        wu1=Wu1, bu1=bu1, wu2=Wu2, bu2=bu2,
    )

    x = jax.random.normal(ks[10], (B, N, I), jnp.float32)
    edge_attr = jax.random.normal(ks[11], (B, E, F), jnp.float32)

    x_out, msg_out = gnn_layer(x, edge_attr, send, recv, params)
    x_out, msg_out = jax.block_until_ready((x_out, msg_out))

    ref_fn = jax.vmap(lambda xb, eb: gnn_layer_ref(xb, eb, send, recv, params))
    x_ref, msg_ref = ref_fn(x, edge_attr)

    assert x_out.shape == (B, N, H) and msg_out.shape == (B, E, H)
    # bf16 MXU operands with f32 accumulation -> compare at bf16-level tolerance.
    assert jnp.allclose(x_out, x_ref, rtol=5e-2, atol=5e-2), "node output mismatch"
    assert jnp.allclose(msg_out, msg_ref, rtol=5e-2, atol=5e-2), "edge message mismatch"

    print("KERNEL_OK")
</pallas_src>

<mosaic_0001>
module attributes {stable_mosaic.version = 11 : i64} {
  func.func @gnn_layer_kernel(%arg0: i32, %arg1: memref<56x1xi32, #tpu.memory_space<vmem>>, %arg2: memref<56x1xi32, #tpu.memory_space<vmem>>, %arg3: memref<1x56xi32, #tpu.memory_space<vmem>>, %arg4: memref<1x8x16xf32, #tpu.memory_space<vmem>>, %arg5: memref<1x56x64xf32, #tpu.memory_space<vmem>>, %arg6: memref<16x128xbf16, #tpu.memory_space<vmem>>, %arg7: memref<16x128xbf16, #tpu.memory_space<vmem>>, %arg8: memref<64x128xbf16, #tpu.memory_space<vmem>>, %arg9: memref<1x128xf32, #tpu.memory_space<vmem>>, %arg10: memref<128x128xbf16, #tpu.memory_space<vmem>>, %arg11: memref<1x128xf32, #tpu.memory_space<vmem>>, %arg12: memref<16x128xbf16, #tpu.memory_space<vmem>>, %arg13: memref<1x128xf32, #tpu.memory_space<vmem>>, %arg14: memref<128x128xbf16, #tpu.memory_space<vmem>>, %arg15: memref<1x128xf32, #tpu.memory_space<vmem>>, %arg16: memref<128x128xbf16, #tpu.memory_space<vmem>>, %arg17: memref<1x128xf32, #tpu.memory_space<vmem>>, %arg18: memref<1x8x128xf32, #tpu.memory_space<vmem>>, %arg19: memref<1x56x128xf32, #tpu.memory_space<vmem>>) attributes {dimension_semantics = [#tpu.dimension_semantics<parallel>], iteration_bounds = array<i64: 4>, scalar_prefetch = 0 : i64, scratch_operands = 0 : i64, tpu.core_type = #tpu.core_type<tc>, window_params = [{pipeline_mode = #tpu.pipeline_mode<synchronous>, transform_indices = @transform_0, window_bounds = array<i64: 56, 1>}, {pipeline_mode = #tpu.pipeline_mode<synchronous>, transform_indices = @transform_1, window_bounds = array<i64: 56, 1>}, {pipeline_mode = #tpu.pipeline_mode<synchronous>, transform_indices = @transform_2, window_bounds = array<i64: 1, 56>}, {transform_indices = @transform_3, window_bounds = array<i64: 1, 8, 16>}, {transform_indices = @transform_4, window_bounds = array<i64: 1, 56, 64>}, {pipeline_mode = #tpu.pipeline_mode<synchronous>, transform_indices = @transform_5, window_bounds = array<i64: 16, 128>}, {pipeline_mode = #tpu.pipeline_mode<synchronous>, transform_indices = @transform_6, window_bounds = array<i64: 16, 128>}, {pipeline_mode = #tpu.pipeline_mode<synchronous>, transform_indices = @transform_7, window_bounds = array<i64: 64, 128>}, {pipeline_mode = #tpu.pipeline_mode<synchronous>, transform_indices = @transform_8, window_bounds = array<i64: 1, 128>}, {pipeline_mode = #tpu.pipeline_mode<synchronous>, transform_indices = @transform_9, window_bounds = array<i64: 128, 128>}, {pipeline_mode = #tpu.pipeline_mode<synchronous>, transform_indices = @transform_10, window_bounds = array<i64: 1, 128>}, {pipeline_mode = #tpu.pipeline_mode<synchronous>, transform_indices = @transform_11, window_bounds = array<i64: 16, 128>}, {pipeline_mode = #tpu.pipeline_mode<synchronous>, transform_indices = @transform_12, window_bounds = array<i64: 1, 128>}, {pipeline_mode = #tpu.pipeline_mode<synchronous>, transform_indices = @transform_13, window_bounds = array<i64: 128, 128>}, {pipeline_mode = #tpu.pipeline_mode<synchronous>, transform_indices = @transform_14, window_bounds = array<i64: 1, 128>}, {pipeline_mode = #tpu.pipeline_mode<synchronous>, transform_indices = @transform_15, window_bounds = array<i64: 128, 128>}, {pipeline_mode = #tpu.pipeline_mode<synchronous>, transform_indices = @transform_16, window_bounds = array<i64: 1, 128>}, {transform_indices = @transform_17, window_bounds = array<i64: 1, 8, 128>}, {transform_indices = @transform_18, window_bounds = array<i64: 1, 56, 128>}]} {
    %c0 = arith.constant 0 : index
    %c0_0 = arith.constant 0 : index
    %c0_1 = arith.constant 0 : index
    %0 = vector.load %arg4[%c0, %c0_0, %c0_1] : memref<1x8x16xf32, #tpu.memory_space<vmem>>, vector<1x8x16xf32>
    %1 = vector.shape_cast %0 : vector<1x8x16xf32> to vector<8x16xf32>
    %c0_2 = arith.constant 0 : index
    %c0_3 = arith.constant 0 : index
    %c0_4 = arith.constant 0 : index
    %2 = vector.load %arg5[%c0_2, %c0_3, %c0_4] : memref<1x56x64xf32, #tpu.memory_space<vmem>>, vector<1x56x64xf32>
    %3 = vector.shape_cast %2 : vector<1x56x64xf32> to vector<56x64xf32>
    %c0_5 = arith.constant 0 : index
    %c0_6 = arith.constant 0 : index
    %4 = vector.load %arg1[%c0_5, %c0_6] : memref<56x1xi32, #tpu.memory_space<vmem>>, vector<56x1xi32>
    %c0_7 = arith.constant 0 : index
    %c0_8 = arith.constant 0 : index
    %5 = vector.load %arg2[%c0_7, %c0_8] : memref<56x1xi32, #tpu.memory_space<vmem>>, vector<56x1xi32>
    %c0_9 = arith.constant 0 : index
    %c0_10 = arith.constant 0 : index
    %6 = vector.load %arg3[%c0_9, %c0_10] : memref<1x56xi32, #tpu.memory_space<vmem>>, vector<1x56xi32>
    %7 = tpu.iota {dimensions = array<i32: 1>} : vector<56x8xi32>
    %8 = vector.broadcast %4 : vector<56x1xi32> to vector<56x8xi32>
    %9 = arith.cmpi eq, %7, %8 : vector<56x8xi32>
    %10 = arith.extui %9 : vector<56x8xi1> to vector<56x8xi32>
    %11 = arith.sitofp %10 : vector<56x8xi32> to vector<56x8xf32>
    %12 = arith.truncf %11 : vector<56x8xf32> to vector<56x8xbf16>
    %13 = vector.broadcast %5 : vector<56x1xi32> to vector<56x8xi32>
    %14 = arith.cmpi eq, %7, %13 : vector<56x8xi32>
    %15 = arith.extui %14 : vector<56x8xi1> to vector<56x8xi32>
    %16 = arith.sitofp %15 : vector<56x8xi32> to vector<56x8xf32>
    %17 = arith.truncf %16 : vector<56x8xf32> to vector<56x8xbf16>
    %18 = tpu.iota {dimensions = array<i32: 0>} : vector<8x56xi32>
    %19 = vector.broadcast %6 : vector<1x56xi32> to vector<8x56xi32>
    %20 = arith.cmpi eq, %18, %19 : vector<8x56xi32>
    %21 = arith.extui %20 : vector<8x56xi1> to vector<8x56xi32>
    %22 = arith.sitofp %21 : vector<8x56xi32> to vector<8x56xf32>
    %23 = arith.truncf %1 : vector<8x16xf32> to vector<8x16xbf16>
    %c0_11 = arith.constant 0 : index
    %c0_12 = arith.constant 0 : index
    %24 = vector.load %arg6[%c0_11, %c0_12] : memref<16x128xbf16, #tpu.memory_space<vmem>>, vector<16x128xbf16>
    %cst = arith.constant dense<0.000000e+00> : vector<8x128xf32>
    %25 = tpu.matmul %23, %24, %cst {dimension_numbers = #tpu.dot_dimension_numbers<[1], [0], [0], [1], [0, 0, 1, 1], [], []>} : vector<8x16xbf16>, vector<16x128xbf16>, vector<8x128xf32> -> vector<8x128xf32>
    %c0_13 = arith.constant 0 : index
    %c0_14 = arith.constant 0 : index
    %26 = vector.load %arg7[%c0_13, %c0_14] : memref<16x128xbf16, #tpu.memory_space<vmem>>, vector<16x128xbf16>
    %cst_15 = arith.constant dense<0.000000e+00> : vector<8x128xf32>
    %27 = tpu.matmul %23, %26, %cst_15 {dimension_numbers = #tpu.dot_dimension_numbers<[1], [0], [0], [1], [0, 0, 1, 1], [], []>} : vector<8x16xbf16>, vector<16x128xbf16>, vector<8x128xf32> -> vector<8x128xf32>
    %28 = arith.truncf %3 : vector<56x64xf32> to vector<56x64xbf16>
    %c0_16 = arith.constant 0 : index
    %c0_17 = arith.constant 0 : index
    %29 = vector.load %arg8[%c0_16, %c0_17] : memref<64x128xbf16, #tpu.memory_space<vmem>>, vector<64x128xbf16>
    %cst_18 = arith.constant dense<0.000000e+00> : vector<56x128xf32>
    %30 = tpu.matmul %28, %29, %cst_18 {dimension_numbers = #tpu.dot_dimension_numbers<[1], [0], [0], [1], [0, 0, 1, 1], [], []>} : vector<56x64xbf16>, vector<64x128xbf16>, vector<56x128xf32> -> vector<56x128xf32>
    %31 = arith.truncf %25 : vector<8x128xf32> to vector<8x128xbf16>
    %cst_19 = arith.constant dense<0.000000e+00> : vector<56x128xf32>
    %32 = tpu.matmul %12, %31, %cst_19 {dimension_numbers = #tpu.dot_dimension_numbers<[1], [0], [0], [1], [0, 0, 1, 1], [], []>} : vector<56x8xbf16>, vector<8x128xbf16>, vector<56x128xf32> -> vector<56x128xf32>
    %33 = arith.truncf %27 : vector<8x128xf32> to vector<8x128xbf16>
    %cst_20 = arith.constant dense<0.000000e+00> : vector<56x128xf32>
    %34 = tpu.matmul %17, %33, %cst_20 {dimension_numbers = #tpu.dot_dimension_numbers<[1], [0], [0], [1], [0, 0, 1, 1], [], []>} : vector<56x8xbf16>, vector<8x128xbf16>, vector<56x128xf32> -> vector<56x128xf32>
    %35 = arith.addf %32, %34 : vector<56x128xf32>
    %36 = arith.addf %35, %30 : vector<56x128xf32>
    %c0_21 = arith.constant 0 : index
    %c0_22 = arith.constant 0 : index
    %37 = vector.load %arg9[%c0_21, %c0_22] : memref<1x128xf32, #tpu.memory_space<vmem>>, vector<1x128xf32>
    %38 = vector.broadcast %37 : vector<1x128xf32> to vector<56x128xf32>
    %39 = arith.addf %36, %38 : vector<56x128xf32>
    %40 = arith.negf %39 : vector<56x128xf32>
    %41 = math.exp %40 : vector<56x128xf32>
    %cst_23 = arith.constant 1.000000e+00 : f32
    %42 = vector.broadcast %cst_23 : f32 to vector<56x128xf32>
    %43 = arith.addf %42, %41 : vector<56x128xf32>
    %44 = arith.divf %42, %43 : vector<56x128xf32>
    %45 = arith.mulf %39, %44 : vector<56x128xf32>
    %46 = arith.truncf %45 : vector<56x128xf32> to vector<56x128xbf16>
    %c0_24 = arith.constant 0 : index
    %c0_25 = arith.constant 0 : index
    %47 = vector.load %arg10[%c0_24, %c0_25] : memref<128x128xbf16, #tpu.memory_space<vmem>>, vector<128x128xbf16>
    %cst_26 = arith.constant dense<0.000000e+00> : vector<56x128xf32>
    %48 = tpu.matmul %46, %47, %cst_26 {dimension_numbers = #tpu.dot_dimension_numbers<[1], [0], [0], [1], [0, 0, 1, 1], [], []>} : vector<56x128xbf16>, vector<128x128xbf16>, vector<56x128xf32> -> vector<56x128xf32>
    %c0_27 = arith.constant 0 : index
    %c0_28 = arith.constant 0 : index
    %49 = vector.load %arg11[%c0_27, %c0_28] : memref<1x128xf32, #tpu.memory_space<vmem>>, vector<1x128xf32>
    %50 = vector.broadcast %49 : vector<1x128xf32> to vector<56x128xf32>
    %51 = arith.addf %48, %50 : vector<56x128xf32>
    %52 = arith.negf %51 : vector<56x128xf32>
    %53 = math.exp %52 : vector<56x128xf32>
    %cst_29 = arith.constant 1.000000e+00 : f32
    %54 = vector.broadcast %cst_29 : f32 to vector<56x128xf32>
    %55 = arith.addf %54, %53 : vector<56x128xf32>
    %56 = arith.divf %54, %55 : vector<56x128xf32>
    %57 = arith.mulf %51, %56 : vector<56x128xf32>
    %c0_30 = arith.constant 0 : index
    %c0_31 = arith.constant 0 : index
    %c0_32 = arith.constant 0 : index
    %58 = vector.load %arg19[%c0_30, %c0_31, %c0_32] : memref<1x56x128xf32, #tpu.memory_space<vmem>>, vector<1x56x128xf32>
    %59 = vector.shape_cast %58 : vector<1x56x128xf32> to vector<56x128xf32>
    %60 = vector.shape_cast %57 : vector<56x128xf32> to vector<1x56x128xf32>
    tpu.vector_store %arg19[%c0_30, %c0_31, %c0_32], %60 {strides = array<i32>} : memref<1x56x128xf32, #tpu.memory_space<vmem>>, vector<1x56x128xf32>,
    %61 = arith.truncf %22 : vector<8x56xf32> to vector<8x56xbf16>
    %62 = arith.truncf %57 : vector<56x128xf32> to vector<56x128xbf16>
    %cst_33 = arith.constant dense<0.000000e+00> : vector<8x128xf32>
    %63 = tpu.matmul %61, %62, %cst_33 {dimension_numbers = #tpu.dot_dimension_numbers<[1], [0], [0], [1], [0, 0, 1, 1], [], []>} : vector<8x56xbf16>, vector<56x128xbf16>, vector<8x128xf32> -> vector<8x128xf32>
    %cst_34 = arith.constant dense<0.000000e+00> : vector<8xf32>
    %64 = vector.multi_reduction <add>, %22, %cst_34 [1] : vector<8x56xf32> to vector<8xf32>
    %65 = vector.shape_cast %64 : vector<8xf32> to vector<8x1xf32>
    %cst_35 = arith.constant 1.000000e+00 : f32
    %66 = vector.broadcast %cst_35 : f32 to vector<8x1xf32>
    %67 = arith.maximumf %65, %66 : vector<8x1xf32>
    %68 = tpu.reciprocal %67 {approx = true} : vector<8x1xf32> -> vector<8x1xf32>
    %cst_36 = arith.constant 0.000000e+00 : f32
    %69 = vector.broadcast %cst_36 : f32 to vector<8x1xf32>
    %70 = arith.cmpf ogt, %65, %69 : vector<8x1xf32>
    %71 = vector.broadcast %68 : vector<8x1xf32> to vector<8x128xf32>
    %72 = arith.mulf %63, %71 : vector<8x128xf32>
    %cst_37 = arith.constant 0.000000e+00 : f32
    %73 = vector.shape_cast %70 : vector<8x1xi1> to vector<8x1xi1>
    %74 = vector.broadcast %73 : vector<8x1xi1> to vector<8x128xi1>
    %75 = vector.broadcast %cst_37 : f32 to vector<8x128xf32>
    %76 = arith.select %74, %72, %75 : vector<8x128xi1>, vector<8x128xf32>
    %c0_38 = arith.constant 0 : index
    %c0_39 = arith.constant 0 : index
    %77 = vector.load %arg12[%c0_38, %c0_39] : memref<16x128xbf16, #tpu.memory_space<vmem>>, vector<16x128xbf16>
    %cst_40 = arith.constant dense<0.000000e+00> : vector<8x128xf32>
    %78 = tpu.matmul %23, %77, %cst_40 {dimension_numbers = #tpu.dot_dimension_numbers<[1], [0], [0], [1], [0, 0, 1, 1], [], []>} : vector<8x16xbf16>, vector<16x128xbf16>, vector<8x128xf32> -> vector<8x128xf32>
    %c0_41 = arith.constant 0 : index
    %c0_42 = arith.constant 0 : index
    %79 = vector.load %arg13[%c0_41, %c0_42] : memref<1x128xf32, #tpu.memory_space<vmem>>, vector<1x128xf32>
    %80 = vector.broadcast %79 : vector<1x128xf32> to vector<8x128xf32>
    %81 = arith.addf %78, %80 : vector<8x128xf32>
    %82 = arith.addf %81, %76 : vector<8x128xf32>
    %83 = arith.truncf %82 : vector<8x128xf32> to vector<8x128xbf16>
    %c0_43 = arith.constant 0 : index
    %c0_44 = arith.constant 0 : index
    %84 = vector.load %arg14[%c0_43, %c0_44] : memref<128x128xbf16, #tpu.memory_space<vmem>>, vector<128x128xbf16>
    %cst_45 = arith.constant dense<0.000000e+00> : vector<8x128xf32>
    %85 = tpu.matmul %83, %84, %cst_45 {dimension_numbers = #tpu.dot_dimension_numbers<[1], [0], [0], [1], [0, 0, 1, 1], [], []>} : vector<8x128xbf16>, vector<128x128xbf16>, vector<8x128xf32> -> vector<8x128xf32>
    %c0_46 = arith.constant 0 : index
    %c0_47 = arith.constant 0 : index
    %86 = vector.load %arg15[%c0_46, %c0_47] : memref<1x128xf32, #tpu.memory_space<vmem>>, vector<1x128xf32>
    %87 = vector.broadcast %86 : vector<1x128xf32> to vector<8x128xf32>
    %88 = arith.addf %85, %87 : vector<8x128xf32>
    %89 = arith.negf %88 : vector<8x128xf32>
    %90 = math.exp %89 : vector<8x128xf32>
    %cst_48 = arith.constant 1.000000e+00 : f32
    %91 = vector.broadcast %cst_48 : f32 to vector<8x128xf32>
    %92 = arith.addf %91, %90 : vector<8x128xf32>
    %93 = arith.divf %91, %92 : vector<8x128xf32>
    %94 = arith.mulf %88, %93 : vector<8x128xf32>
    %95 = arith.truncf %94 : vector<8x128xf32> to vector<8x128xbf16>
    %c0_49 = arith.constant 0 : index
    %c0_50 = arith.constant 0 : index
    %96 = vector.load %arg16[%c0_49, %c0_50] : memref<128x128xbf16, #tpu.memory_space<vmem>>, vector<128x128xbf16>
    %cst_51 = arith.constant dense<0.000000e+00> : vector<8x128xf32>
    %97 = tpu.matmul %95, %96, %cst_51 {dimension_numbers = #tpu.dot_dimension_numbers<[1], [0], [0], [1], [0, 0, 1, 1], [], []>} : vector<8x128xbf16>, vector<128x128xbf16>, vector<8x128xf32> -> vector<8x128xf32>
    %c0_52 = arith.constant 0 : index
    %c0_53 = arith.constant 0 : index
    %98 = vector.load %arg17[%c0_52, %c0_53] : memref<1x128xf32, #tpu.memory_space<vmem>>, vector<1x128xf32>
    %99 = vector.broadcast %98 : vector<1x128xf32> to vector<8x128xf32>
    %100 = arith.addf %97, %99 : vector<8x128xf32>
    %101 = arith.addf %82, %100 : vector<8x128xf32>
    %c0_54 = arith.constant 0 : index
    %c0_55 = arith.constant 0 : index
    %c0_56 = arith.constant 0 : index
    %102 = vector.load %arg18[%c0_54, %c0_55, %c0_56] : memref<1x8x128xf32, #tpu.memory_space<vmem>>, vector<1x8x128xf32>
    %103 = vector.shape_cast %102 : vector<1x8x128xf32> to vector<8x128xf32>
    %104 = vector.shape_cast %101 : vector<8x128xf32> to vector<1x8x128xf32>
    tpu.vector_store %arg18[%c0_54, %c0_55, %c0_56], %104 {strides = array<i32>} : memref<1x8x128xf32, #tpu.memory_space<vmem>>, vector<1x8x128xf32>,
    return
  }
  func.func @transform_0(%arg0: i32) -> (i32, i32) {
    %c0_i32 = arith.constant 0 : i32
    %c0_i32_0 = arith.constant 0 : i32
    %c0_i32_1 = arith.constant 0 : i32
    return %c0_i32, %c0_i32_0 : i32, i32
  }
  func.func @transform_1(%arg0: i32) -> (i32, i32) {
    %c0_i32 = arith.constant 0 : i32
    %c0_i32_0 = arith.constant 0 : i32
    %c0_i32_1 = arith.constant 0 : i32
    return %c0_i32, %c0_i32_0 : i32, i32
  }
  func.func @transform_2(%arg0: i32) -> (i32, i32) {
    %c0_i32 = arith.constant 0 : i32
    %c0_i32_0 = arith.constant 0 : i32
    %c0_i32_1 = arith.constant 0 : i32
    return %c0_i32, %c0_i32_0 : i32, i32
  }
  func.func @transform_3(%arg0: i32) -> (i32, i32, i32) {
    %c0_i32 = arith.constant 0 : i32
    %c0_i32_0 = arith.constant 0 : i32
    %c0_i32_1 = arith.constant 0 : i32
    return %arg0, %c0_i32, %c0_i32_0 : i32, i32, i32
  }
  func.func @transform_4(%arg0: i32) -> (i32, i32, i32) {
    %c0_i32 = arith.constant 0 : i32
    %c0_i32_0 = arith.constant 0 : i32
    %c0_i32_1 = arith.constant 0 : i32
    return %arg0, %c0_i32, %c0_i32_0 : i32, i32, i32
  }
  func.func @transform_5(%arg0: i32) -> (i32, i32) {
    %c0_i32 = arith.constant 0 : i32
    %c0_i32_0 = arith.constant 0 : i32
    %c0_i32_1 = arith.constant 0 : i32
    return %c0_i32, %c0_i32_0 : i32, i32
  }
  func.func @transform_6(%arg0: i32) -> (i32, i32) {
    %c0_i32 = arith.constant 0 : i32
    %c0_i32_0 = arith.constant 0 : i32
    %c0_i32_1 = arith.constant 0 : i32
    return %c0_i32, %c0_i32_0 : i32, i32
  }
  func.func @transform_7(%arg0: i32) -> (i32, i32) {
    %c0_i32 = arith.constant 0 : i32
    %c0_i32_0 = arith.constant 0 : i32
    %c0_i32_1 = arith.constant 0 : i32
    return %c0_i32, %c0_i32_0 : i32, i32
  }
  func.func @transform_8(%arg0: i32) -> (i32, i32) {
    %c0_i32 = arith.constant 0 : i32
    %c0_i32_0 = arith.constant 0 : i32
    %c0_i32_1 = arith.constant 0 : i32
    return %c0_i32, %c0_i32_0 : i32, i32
  }
  func.func @transform_9(%arg0: i32) -> (i32, i32) {
    %c0_i32 = arith.constant 0 : i32
    %c0_i32_0 = arith.constant 0 : i32
    %c0_i32_1 = arith.constant 0 : i32
    return %c0_i32, %c0_i32_0 : i32, i32
  }
  func.func @transform_10(%arg0: i32) -> (i32, i32) {
    %c0_i32 = arith.constant 0 : i32
    %c0_i32_0 = arith.constant 0 : i32
    %c0_i32_1 = arith.constant 0 : i32
    return %c0_i32, %c0_i32_0 : i32, i32
  }
  func.func @transform_11(%arg0: i32) -> (i32, i32) {
    %c0_i32 = arith.constant 0 : i32
    %c0_i32_0 = arith.constant 0 : i32
    %c0_i32_1 = arith.constant 0 : i32
    return %c0_i32, %c0_i32_0 : i32, i32
  }
  func.func @transform_12(%arg0: i32) -> (i32, i32) {
    %c0_i32 = arith.constant 0 : i32
    %c0_i32_0 = arith.constant 0 : i32
    %c0_i32_1 = arith.constant 0 : i32
    return %c0_i32, %c0_i32_0 : i32, i32
  }
  func.func @transform_13(%arg0: i32) -> (i32, i32) {
    %c0_i32 = arith.constant 0 : i32
    %c0_i32_0 = arith.constant 0 : i32
    %c0_i32_1 = arith.constant 0 : i32
    return %c0_i32, %c0_i32_0 : i32, i32
  }
  func.func @transform_14(%arg0: i32) -> (i32, i32) {
    %c0_i32 = arith.constant 0 : i32
    %c0_i32_0 = arith.constant 0 : i32
    %c0_i32_1 = arith.constant 0 : i32
    return %c0_i32, %c0_i32_0 : i32, i32
  }
  func.func @transform_15(%arg0: i32) -> (i32, i32) {
    %c0_i32 = arith.constant 0 : i32
    %c0_i32_0 = arith.constant 0 : i32
    %c0_i32_1 = arith.constant 0 : i32
    return %c0_i32, %c0_i32_0 : i32, i32
  }
  func.func @transform_16(%arg0: i32) -> (i32, i32) {
    %c0_i32 = arith.constant 0 : i32
    %c0_i32_0 = arith.constant 0 : i32
    %c0_i32_1 = arith.constant 0 : i32
    return %c0_i32, %c0_i32_0 : i32, i32
  }
  func.func @transform_17(%arg0: i32) -> (i32, i32, i32) {
    %c0_i32 = arith.constant 0 : i32
    %c0_i32_0 = arith.constant 0 : i32
    %c0_i32_1 = arith.constant 0 : i32
    return %arg0, %c0_i32, %c0_i32_0 : i32, i32, i32
  }
  func.func @transform_18(%arg0: i32) -> (i32, i32, i32) {
    %c0_i32 = arith.constant 0 : i32
    %c0_i32_0 = arith.constant 0 : i32
    %c0_i32_1 = arith.constant 0 : i32
    return %arg0, %c0_i32, %c0_i32_0 : i32, i32, i32
  }
}

</mosaic_0001>

<llo_original>
// kernel: tpu_custom_call.1
$region0: #{tpu_custom_call.1}
  #allocation0 [shape = 'u32[]', space=smem, size = 0x4, offset = 0x4, fixed_abs, tag = 'smem constant byte address 0x4 - core index']
  #allocation1 [shape = 'u32[72,128]{1,0:T(1,128)}', space=vmem, size = 0x9000, scoped, tag = 'internal scratch']
  %s0 = inlined_call_operand.vmem [shape: s32[56,1], index: 0, kind: input, shape index: {}]
  %s1 = inlined_call_operand.vmem [shape: s32[56,1], index: 1, kind: input, shape index: {}]
  %s2 = inlined_call_operand.vmem [shape: s32[1,56], index: 2, kind: input, shape index: {}]
  %s3 = inlined_call_operand.vmem [shape: f32[4,8,16], index: 3, kind: input, shape index: {}]
  %s4 = inlined_call_operand.hbm [shape: f32[4,56,64], index: 4, kind: input, shape index: {}]
  %s5 = inlined_call_operand.vmem [shape: bf16[16,128], index: 5, kind: input, shape index: {}]
  %s6 = inlined_call_operand.vmem [shape: bf16[16,128], index: 6, kind: input, shape index: {}]
  %s7 = inlined_call_operand.hbm [shape: bf16[64,128], index: 7, kind: input, shape index: {}]
  %s8 = inlined_call_operand.hbm [shape: f32[1,128], index: 8, kind: input, shape index: {}]
  %s9 = inlined_call_operand.vmem [shape: bf16[128,128], index: 9, kind: input, shape index: {}]
  %s10 = inlined_call_operand.vmem [shape: f32[1,128], index: 10, kind: input, shape index: {}]
  %s11 = inlined_call_operand.vmem [shape: bf16[16,128], index: 11, kind: input, shape index: {}]
  %s12 = inlined_call_operand.vmem [shape: f32[1,128], index: 12, kind: input, shape index: {}]
  %s13 = inlined_call_operand.hbm [shape: bf16[128,128], index: 13, kind: input, shape index: {}]
  %s14 = inlined_call_operand.vmem [shape: f32[1,128], index: 14, kind: input, shape index: {}]
  %s15 = inlined_call_operand.hbm [shape: bf16[128,128], index: 15, kind: input, shape index: {}]
  %s16 = inlined_call_operand.vmem [shape: f32[1,128], index: 16, kind: input, shape index: {}]
  %s17 = inlined_call_operand.hbm [shape: f32[4,8,128], index: 17, kind: output, shape index: {0}]
  %s18 = inlined_call_operand.hbm [shape: f32[4,56,128], index: 18, kind: output, shape index: {1}]
  %19 = xla_tuple %s17, %s18
  %s20 = sld [smem:[#allocation0]]
  $region129: #{tpu_custom_call.1} parent=0
    _
  %s22 = ssub.s32 1, %s20
  %s23 = scalar_select 0, %s22, %s20
  $region1: #{tpu_custom_call.1} parent=0
    #allocation2 [shape = 'u8[57344]{0}', space=vmem, size = 0xe000, scoped, tag = 'input window, operand 4']
    #allocation3 [shape = 's32[2]{0}', space=sflag, size = 0x8, scoped, tag = 'scoped memory for tpu_custom_call.1']
    #allocation4 [shape = 's32[2]{0}', space=sflag, size = 0x8, scoped, tag = 'scoped memory for tpu_custom_call.1']
    #allocation5 [shape = 'u8[16384]{0}', space=vmem, size = 0x4000, scoped, tag = 'input window, operand 7, single buffered']
    #allocation6 [shape = 's32[1]{0}', space=sflag, size = 0x4, scoped, tag = 'scoped memory for tpu_custom_call.1']
    #allocation7 [shape = 'u8[512]{0}', space=vmem, size = 0x400, scoped, tag = 'input window, operand 8, single buffered']
    #allocation8 [shape = 'u8[32768]{0}', space=vmem, size = 0x8000, scoped, tag = 'input window, operand 13, single buffered']
    #allocation9 [shape = 's32[1]{0}', space=sflag, size = 0x4, scoped, tag = 'scoped memory for tpu_custom_call.1']
    #allocation10 [shape = 'u8[32768]{0}', space=vmem, size = 0x8000, scoped, tag = 'input window, operand 15, single buffered']
    #allocation11 [shape = 'u8[8192]{0}', space=vmem, size = 0x2000, scoped, tag = 'output window, operand 0']
    #allocation12 [shape = 'u8[57344]{0}', space=vmem, size = 0xe000, scoped, tag = 'output window, operand 1']
    #allocation13 [shape = 's32[2]{0}', space=sflag, size = 0x8, scoped, tag = 'scoped memory for tpu_custom_call.1']
    %24 = vsyncpa [#allocation3], 0
    %s25 = scalar_lea.sflag [#allocation3], 1
    %26 = vsyncpa %s25, 0
    %27 = vsyncpa [#allocation6], 0
    %28 = vsyncpa [#allocation9], 0
    %29 = vsyncpa [#allocation4], 0
    %s30 = scalar_lea.sflag [#allocation4], 1
    %31 = vsyncpa %s30, 0
    %32 = vsyncpa [#allocation13], 0
    %s33 = scalar_lea.sflag [#allocation13], 1
    %34 = vsyncpa %s33, 0
    loop: start=0, step=1, limit=6
    $region2: #{tpu_custom_call.1} parent=1 // loop_pre_header
      _
    $region3: #{tpu_custom_call.1} parent=1 // loop_header
      %s36 = sphi 0, %s40
      %p37 = scmp.ge.s32.totalorder %s36, 6
      %s44 = sphi 0, %s44
      %s46 = sphi 0, %s44
      %s47 = sphi 0, %s46
      %s61 = sphi 0, %s47
      %s65 = sphi 0, %s65
      %s67 = sphi 0, %s65
      %s68 = sphi 0, %s67
      %s82 = sphi 0, %s68
      %s86 = sphi 0, %s86
      %s88 = sphi 0, %s86
      %s89 = sphi 0, %s88
      %s103 = sphi 0, %s89
      %s109 = sphi 0, %s111
      %s112 = sphi 0, %s109
      %s113 = sphi 0, %s112
      %s129 = sphi 0, %s113
      %s135 = sphi 0, %s137
      %s138 = sphi 0, %s135
      %s139 = sphi 0, %s138
      %s155 = sphi 0, %s139
      %s159 = sphi 0, %s159
      %s161 = sphi 0, %s159
      %s162 = sphi 0, %s161
      %s176 = sphi 0, %s162
      %s180 = sphi 0, %s180
      %s182 = sphi 0, %s180
      %s183 = sphi 0, %s182
      %s197 = sphi 0, %s183
      %s201 = sphi 0, %s201
      %s203 = sphi 0, %s201
      %s204 = sphi 0, %s203
      %s218 = sphi 0, %s204
      %s222 = sphi 0, %s222
      %s224 = sphi 0, %s222
      %s225 = sphi 0, %s224
      %s239 = sphi 0, %s225
      %s243 = sphi 0, %s243
      %s245 = sphi 0, %s243
      %s246 = sphi 0, %s245
      %s260 = sphi 0, %s246
      %s264 = sphi 0, %s264
      %s266 = sphi 0, %s264
      %s267 = sphi 0, %s266
      %s281 = sphi 0, %s267
      %s285 = sphi 0, %s285
      %s287 = sphi 0, %s285
      %s288 = sphi 0, %s287
      %s302 = sphi 0, %s288
      %s306 = sphi 0, %s306
      %s308 = sphi 0, %s306
      %s309 = sphi 0, %s308
      %s323 = sphi 0, %s309
      %s327 = sphi 0, %s327
      %s329 = sphi 0, %s327
      %s330 = sphi 0, %s329
      %s344 = sphi 0, %s330
      %s348 = sphi 0, %s348
      %s350 = sphi 0, %s348
      %s351 = sphi 0, %s350
      %s365 = sphi 0, %s351
      %s369 = sphi 0, %s369
      %s371 = sphi 0, %s369
      %s372 = sphi 0, %s371
      %s386 = sphi 0, %s372
      %s390 = sphi 0, %s390
      %s392 = sphi 0, %s390
      %s393 = sphi 0, %s392
      %s407 = sphi 0, %s393
      %s413 = sphi 0, %s415
      %s416 = sphi 0, %s413
      %s417 = sphi 0, %s416
      %s433 = sphi 0, %s417
      %s439 = sphi 0, %s441
      %s442 = sphi 0, %s439
      %s443 = sphi 0, %s442
      %s459 = sphi 0, %s443
    $region4: #{tpu_custom_call.1} parent=1 // loop_header_branch
      %39 = sbr.rel (%p37) target = $region8
    $region5: #{tpu_custom_call.1} parent=1 // loop_body
      %s41 = ssub.s32 %s36, 1
      %s42 = ssub.s32 %s36, 2
      %s43 = sadd.s32 %s36, 1
      %s45 = sadd.s32 %s44, 1
      %p48 = scmp.eq.s32.totalorder %s36, 3
      %p49 = scmp.ne.s32.totalorder %s44, %s46
      %p50 = scmp.eq.s32.totalorder %s36, 0
      %p51 = por %p49, %p50
      %p52 = scmp.ne.s32.totalorder %s44, %s46
      %p53 = scmp.eq.s32.totalorder %s41, 3
      %p54 = por %p52, %p53
      %p55 = scmp.ne.s32.totalorder %s46, %s47
      %p56 = scmp.eq.s32.totalorder %s41, 0
      %p57 = por %p55, %p56
      %p58 = scmp.ne.s32.totalorder %s46, %s47
      %p59 = scmp.eq.s32.totalorder %s42, 3
      %p60 = por %p58, %p59
      %p62 = scmp.ne.s32.totalorder %s47, %s61
      %p63 = scmp.eq.s32.totalorder %s42, 0
      %p64 = por %p62, %p63
      %s66 = sadd.s32 %s65, 1
      %p69 = scmp.eq.s32.totalorder %s36, 3
      %p70 = scmp.ne.s32.totalorder %s65, %s67
      %p71 = scmp.eq.s32.totalorder %s36, 0
      %p72 = por %p70, %p71
      %p73 = scmp.ne.s32.totalorder %s65, %s67
      %p74 = scmp.eq.s32.totalorder %s41, 3
      %p75 = por %p73, %p74
      %p76 = scmp.ne.s32.totalorder %s67, %s68
      %p77 = scmp.eq.s32.totalorder %s41, 0
      %p78 = por %p76, %p77
      %p79 = scmp.ne.s32.totalorder %s67, %s68
      %p80 = scmp.eq.s32.totalorder %s42, 3
      %p81 = por %p79, %p80
      %p83 = scmp.ne.s32.totalorder %s68, %s82
      %p84 = scmp.eq.s32.totalorder %s42, 0
      %p85 = por %p83, %p84
      %s87 = sadd.s32 %s86, 1
      %p90 = scmp.eq.s32.totalorder %s36, 3
      %p91 = scmp.ne.s32.totalorder %s86, %s88
      %p92 = scmp.eq.s32.totalorder %s36, 0
      %p93 = por %p91, %p92
      %p94 = scmp.ne.s32.totalorder %s86, %s88
      %p95 = scmp.eq.s32.totalorder %s41, 3
      %p96 = por %p94, %p95
      %p97 = scmp.ne.s32.totalorder %s88, %s89
      %p98 = scmp.eq.s32.totalorder %s41, 0
      %p99 = por %p97, %p98
      %p100 = scmp.ne.s32.totalorder %s88, %s89
      %p101 = scmp.eq.s32.totalorder %s42, 3
      %p102 = por %p100, %p101
      %p104 = scmp.ne.s32.totalorder %s89, %s103
      %p105 = scmp.eq.s32.totalorder %s42, 0
      %p106 = por %p104, %p105
      %s107 = ssub.s32 %s36, %s43
      %p108 = scmp.eq.s32.totalorder %s107, 0
      %s110 = sadd.s32 %s109, 1
      %s111 = scalar_select %p108, %s109, %s110
      %p114 = pneg %p108
      %p115 = scmp.eq.s32.totalorder %s36, 3
      %p116 = por %p114, %p115
      %p117 = scmp.ne.s32.totalorder %s109, %s112
      %p118 = scmp.eq.s32.totalorder %s36, 0
      %p119 = por %p117, %p118
      %p120 = scmp.ne.s32.totalorder %s109, %s112
      %p121 = scmp.eq.s32.totalorder %s41, 3
      %p122 = por %p120, %p121
      %p123 = scmp.ne.s32.totalorder %s112, %s113
      %p124 = scmp.eq.s32.totalorder %s41, 0
      %p125 = por %p123, %p124
      %p126 = scmp.ne.s32.totalorder %s112, %s113
      %p127 = scmp.eq.s32.totalorder %s42, 3
      %p128 = por %p126, %p127
      %p130 = scmp.ne.s32.totalorder %s113, %s129
      %p131 = scmp.eq.s32.totalorder %s42, 0
      %p132 = por %p130, %p131
      %s133 = ssub.s32 %s36, %s43
      %p134 = scmp.eq.s32.totalorder %s133, 0
      %s136 = sadd.s32 %s135, 1
      %s137 = scalar_select %p134, %s135, %s136
      %p140 = pneg %p134
      %p141 = scmp.eq.s32.totalorder %s36, 3
      %p142 = por %p140, %p141
      %p143 = scmp.ne.s32.totalorder %s135, %s138
      %p144 = scmp.eq.s32.totalorder %s36, 0
      %p145 = por %p143, %p144
      %p146 = scmp.ne.s32.totalorder %s135, %s138
      %p147 = scmp.eq.s32.totalorder %s41, 3
      %p148 = por %p146, %p147
      %p149 = scmp.ne.s32.totalorder %s138, %s139
      %p150 = scmp.eq.s32.totalorder %s41, 0
      %p151 = por %p149, %p150
      %p152 = scmp.ne.s32.totalorder %s138, %s139
      %p153 = scmp.eq.s32.totalorder %s42, 3
      %p154 = por %p152, %p153
      %p156 = scmp.ne.s32.totalorder %s139, %s155
      %p157 = scmp.eq.s32.totalorder %s42, 0
      %p158 = por %p156, %p157
      %s160 = sadd.s32 %s159, 1
      %p163 = scmp.eq.s32.totalorder %s36, 3
      %p164 = scmp.ne.s32.totalorder %s159, %s161
      %p165 = scmp.eq.s32.totalorder %s36, 0
      %p166 = por %p164, %p165
      %p167 = scmp.ne.s32.totalorder %s159, %s161
      %p168 = scmp.eq.s32.totalorder %s41, 3
      %p169 = por %p167, %p168
      %p170 = scmp.ne.s32.totalorder %s161, %s162
      %p171 = scmp.eq.s32.totalorder %s41, 0
      %p172 = por %p170, %p171
      %p173 = scmp.ne.s32.totalorder %s161, %s162
      %p174 = scmp.eq.s32.totalorder %s42, 3
      %p175 = por %p173, %p174
      %p177 = scmp.ne.s32.totalorder %s162, %s176
      %p178 = scmp.eq.s32.totalorder %s42, 0
      %p179 = por %p177, %p178
      %s181 = sadd.s32 %s180, 1
      %p184 = scmp.eq.s32.totalorder %s36, 3
      %p185 = scmp.ne.s32.totalorder %s180, %s182
      %p186 = scmp.eq.s32.totalorder %s36, 0
      %p187 = por %p185, %p186
      %p188 = scmp.ne.s32.totalorder %s180, %s182
      %p189 = scmp.eq.s32.totalorder %s41, 3
      %p190 = por %p188, %p189
      %p191 = scmp.ne.s32.totalorder %s182, %s183
      %p192 = scmp.eq.s32.totalorder %s41, 0
      %p193 = por %p191, %p192
      %p194 = scmp.ne.s32.totalorder %s182, %s183
      %p195 = scmp.eq.s32.totalorder %s42, 3
      %p196 = por %p194, %p195
      %p198 = scmp.ne.s32.totalorder %s183, %s197
      %p199 = scmp.eq.s32.totalorder %s42, 0
      %p200 = por %p198, %p199
      %s202 = sadd.s32 %s201, 1
      %p205 = scmp.eq.s32.totalorder %s36, 3
      %p206 = scmp.ne.s32.totalorder %s201, %s203
      %p207 = scmp.eq.s32.totalorder %s36, 0
      %p208 = por %p206, %p207
      %p209 = scmp.ne.s32.totalorder %s201, %s203
      %p210 = scmp.eq.s32.totalorder %s41, 3
      %p211 = por %p209, %p210
      %p212 = scmp.ne.s32.totalorder %s203, %s204
      %p213 = scmp.eq.s32.totalorder %s41, 0
      %p214 = por %p212, %p213
      %p215 = scmp.ne.s32.totalorder %s203, %s204
      %p216 = scmp.eq.s32.totalorder %s42, 3
      %p217 = por %p215, %p216
      %p219 = scmp.ne.s32.totalorder %s204, %s218
      %p220 = scmp.eq.s32.totalorder %s42, 0
      %p221 = por %p219, %p220
      %s223 = sadd.s32 %s222, 1
      %p226 = scmp.eq.s32.totalorder %s36, 3
      %p227 = scmp.ne.s32.totalorder %s222, %s224
      %p228 = scmp.eq.s32.totalorder %s36, 0
      %p229 = por %p227, %p228
      %p230 = scmp.ne.s32.totalorder %s222, %s224
      %p231 = scmp.eq.s32.totalorder %s41, 3
      %p232 = por %p230, %p231
      %p233 = scmp.ne.s32.totalorder %s224, %s225
      %p234 = scmp.eq.s32.totalorder %s41, 0
      %p235 = por %p233, %p234
      %p236 = scmp.ne.s32.totalorder %s224, %s225
      %p237 = scmp.eq.s32.totalorder %s42, 3
      %p238 = por %p236, %p237
      %p240 = scmp.ne.s32.totalorder %s225, %s239
      %p241 = scmp.eq.s32.totalorder %s42, 0
      %p242 = por %p240, %p241
      %s244 = sadd.s32 %s243, 1
      %p247 = scmp.eq.s32.totalorder %s36, 3
      %p248 = scmp.ne.s32.totalorder %s243, %s245
      %p249 = scmp.eq.s32.totalorder %s36, 0
      %p250 = por %p248, %p249
      %p251 = scmp.ne.s32.totalorder %s243, %s245
      %p252 = scmp.eq.s32.totalorder %s41, 3
      %p253 = por %p251, %p252
      %p254 = scmp.ne.s32.totalorder %s245, %s246
      %p255 = scmp.eq.s32.totalorder %s41, 0
      %p256 = por %p254, %p255
      %p257 = scmp.ne.s32.totalorder %s245, %s246
      %p258 = scmp.eq.s32.totalorder %s42, 3
      %p259 = por %p257, %p258
      %p261 = scmp.ne.s32.totalorder %s246, %s260
      %p262 = scmp.eq.s32.totalorder %s42, 0
      %p263 = por %p261, %p262
      %s265 = sadd.s32 %s264, 1
      %p268 = scmp.eq.s32.totalorder %s36, 3
      %p269 = scmp.ne.s32.totalorder %s264, %s266
      %p270 = scmp.eq.s32.totalorder %s36, 0
      %p271 = por %p269, %p270
      %p272 = scmp.ne.s32.totalorder %s264, %s266
      %p273 = scmp.eq.s32.totalorder %s41, 3
      %p274 = por %p272, %p273
      %p275 = scmp.ne.s32.totalorder %s266, %s267
      %p276 = scmp.eq.s32.totalorder %s41, 0
      %p277 = por %p275, %p276
      %p278 = scmp.ne.s32.totalorder %s266, %s267
      %p279 = scmp.eq.s32.totalorder %s42, 3
      %p280 = por %p278, %p279
      %p282 = scmp.ne.s32.totalorder %s267, %s281
      %p283 = scmp.eq.s32.totalorder %s42, 0
      %p284 = por %p282, %p283
      %s286 = sadd.s32 %s285, 1
      %p289 = scmp.eq.s32.totalorder %s36, 3
      %p290 = scmp.ne.s32.totalorder %s285, %s287
      %p291 = scmp.eq.s32.totalorder %s36, 0
      %p292 = por %p290, %p291
      %p293 = scmp.ne.s32.totalorder %s285, %s287
      %p294 = scmp.eq.s32.totalorder %s41, 3
      %p295 = por %p293, %p294
      %p296 = scmp.ne.s32.totalorder %s287, %s288
      %p297 = scmp.eq.s32.totalorder %s41, 0
      %p298 = por %p296, %p297
      %p299 = scmp.ne.s32.totalorder %s287, %s288
      %p300 = scmp.eq.s32.totalorder %s42, 3
      %p301 = por %p299, %p300
      %p303 = scmp.ne.s32.totalorder %s288, %s302
      %p304 = scmp.eq.s32.totalorder %s42, 0
      %p305 = por %p303, %p304
      %s307 = sadd.s32 %s306, 1
      %p310 = scmp.eq.s32.totalorder %s36, 3
      %p311 = scmp.ne.s32.totalorder %s306, %s308
      %p312 = scmp.eq.s32.totalorder %s36, 0
      %p313 = por %p311, %p312
      %p314 = scmp.ne.s32.totalorder %s306, %s308
      %p315 = scmp.eq.s32.totalorder %s41, 3
      %p316 = por %p314, %p315
      %p317 = scmp.ne.s32.totalorder %s308, %s309
      %p318 = scmp.eq.s32.totalorder %s41, 0
      %p319 = por %p317, %p318
      %p320 = scmp.ne.s32.totalorder %s308, %s309
      %p321 = scmp.eq.s32.totalorder %s42, 3
      %p322 = por %p320, %p321
      %p324 = scmp.ne.s32.totalorder %s309, %s323
      %p325 = scmp.eq.s32.totalorder %s42, 0
      %p326 = por %p324, %p325
      %s328 = sadd.s32 %s327, 1
      %p331 = scmp.eq.s32.totalorder %s36, 3
      %p332 = scmp.ne.s32.totalorder %s327, %s329
      %p333 = scmp.eq.s32.totalorder %s36, 0
      %p334 = por %p332, %p333
      %p335 = scmp.ne.s32.totalorder %s327, %s329
      %p336 = scmp.eq.s32.totalorder %s41, 3
      %p337 = por %p335, %p336
      %p338 = scmp.ne.s32.totalorder %s329, %s330
      %p339 = scmp.eq.s32.totalorder %s41, 0
      %p340 = por %p338, %p339
      %p341 = scmp.ne.s32.totalorder %s329, %s330
      %p342 = scmp.eq.s32.totalorder %s42, 3
      %p343 = por %p341, %p342
      %p345 = scmp.ne.s32.totalorder %s330, %s344
      %p346 = scmp.eq.s32.totalorder %s42, 0
      %p347 = por %p345, %p346
      %s349 = sadd.s32 %s348, 1
      %p352 = scmp.eq.s32.totalorder %s36, 3
      %p353 = scmp.ne.s32.totalorder %s348, %s350
      %p354 = scmp.eq.s32.totalorder %s36, 0
      %p355 = por %p353, %p354
      %p356 = scmp.ne.s32.totalorder %s348, %s350
      %p357 = scmp.eq.s32.totalorder %s41, 3
      %p358 = por %p356, %p357
      %p359 = scmp.ne.s32.totalorder %s350, %s351
      %p360 = scmp.eq.s32.totalorder %s41, 0
      %p361 = por %p359, %p360
      %p362 = scmp.ne.s32.totalorder %s350, %s351
      %p363 = scmp.eq.s32.totalorder %s42, 3
      %p364 = por %p362, %p363
      %p366 = scmp.ne.s32.totalorder %s351, %s365
      %p367 = scmp.eq.s32.totalorder %s42, 0
      %p368 = por %p366, %p367
      %s370 = sadd.s32 %s369, 1
      %p373 = scmp.eq.s32.totalorder %s36, 3
      %p374 = scmp.ne.s32.totalorder %s369, %s371
      %p375 = scmp.eq.s32.totalorder %s36, 0
      %p376 = por %p374, %p375
      %p377 = scmp.ne.s32.totalorder %s369, %s371
      %p378 = scmp.eq.s32.totalorder %s41, 3
      %p379 = por %p377, %p378
      %p380 = scmp.ne.s32.totalorder %s371, %s372
      %p381 = scmp.eq.s32.totalorder %s41, 0
      %p382 = por %p380, %p381
      %p383 = scmp.ne.s32.totalorder %s371, %s372
      %p384 = scmp.eq.s32.totalorder %s42, 3
      %p385 = por %p383, %p384
      %p387 = scmp.ne.s32.totalorder %s372, %s386
      %p388 = scmp.eq.s32.totalorder %s42, 0
      %p389 = por %p387, %p388
      %s391 = sadd.s32 %s390, 1
      %p394 = scmp.eq.s32.totalorder %s36, 3
      %p395 = scmp.ne.s32.totalorder %s390, %s392
      %p396 = scmp.eq.s32.totalorder %s36, 0
      %p397 = por %p395, %p396
      %p398 = scmp.ne.s32.totalorder %s390, %s392
      %p399 = scmp.eq.s32.totalorder %s41, 3
      %p400 = por %p398, %p399
      %p401 = scmp.ne.s32.totalorder %s392, %s393
      %p402 = scmp.eq.s32.totalorder %s41, 0
      %p403 = por %p401, %p402
      %p404 = scmp.ne.s32.totalorder %s392, %s393
      %p405 = scmp.eq.s32.totalorder %s42, 3
      %p406 = por %p404, %p405
      %p408 = scmp.ne.s32.totalorder %s393, %s407
      %p409 = scmp.eq.s32.totalorder %s42, 0
      %p410 = por %p408, %p409
      %s411 = ssub.s32 %s36, %s43
      %p412 = scmp.eq.s32.totalorder %s411, 0
      %s414 = sadd.s32 %s413, 1
      %s415 = scalar_select %p412, %s413, %s414
      %p418 = pneg %p412
      %p419 = scmp.eq.s32.totalorder %s36, 3
      %p420 = por %p418, %p419
      %p421 = scmp.ne.s32.totalorder %s413, %s416
      %p422 = scmp.eq.s32.totalorder %s36, 0
      %p423 = por %p421, %p422
      %p424 = scmp.ne.s32.totalorder %s413, %s416
      %p425 = scmp.eq.s32.totalorder %s41, 3
      %p426 = por %p424, %p425
      %p427 = scmp.ne.s32.totalorder %s416, %s417
      %p428 = scmp.eq.s32.totalorder %s41, 0
      %p429 = por %p427, %p428
      %p430 = scmp.ne.s32.totalorder %s416, %s417
      %p431 = scmp.eq.s32.totalorder %s42, 3
      %p432 = por %p430, %p431
      %p434 = scmp.ne.s32.totalorder %s417, %s433
      %p435 = scmp.eq.s32.totalorder %s42, 0
      %p436 = por %p434, %p435
      %s437 = ssub.s32 %s36, %s43
      %p438 = scmp.eq.s32.totalorder %s437, 0
      %s440 = sadd.s32 %s439, 1
      %s441 = scalar_select %p438, %s439, %s440
      %p444 = pneg %p438
      %p445 = scmp.eq.s32.totalorder %s36, 3
      %p446 = por %p444, %p445
      %p447 = scmp.ne.s32.totalorder %s439, %s442
      %p448 = scmp.eq.s32.totalorder %s36, 0
      %p449 = por %p447, %p448
      %p450 = scmp.ne.s32.totalorder %s439, %s442
      %p451 = scmp.eq.s32.totalorder %s41, 3
      %p452 = por %p450, %p451
      %p453 = scmp.ne.s32.totalorder %s442, %s443
      %p454 = scmp.eq.s32.totalorder %s41, 0
      %p455 = por %p453, %p454
      %p456 = scmp.ne.s32.totalorder %s442, %s443
      %p457 = scmp.eq.s32.totalorder %s42, 3
      %p458 = por %p456, %p457
      %p460 = scmp.ne.s32.totalorder %s443, %s459
      %p461 = scmp.eq.s32.totalorder %s42, 0
      %p462 = por %p460, %p461
      %p463 = scmp.le.s32.totalorder 1, %s36
      %p464 = scmp.lt.s32.totalorder %s36, 5
      %p465 = pnand %p463, %p464
      %p466 = pneg %p465
      // Predicated region
      $region9: #{tpu_custom_call.1} parent=5 // pred_check
        _
      $region10: #{tpu_custom_call.1} parent=5 // pred_check_branch
        %468 = sbr.rel (%p465) target = $region12
      $region11: #{tpu_custom_call.1} parent=5 // pred_region
        %s469 = ssub.s32 %s36, 1
        // Predicated region
        $region13: #{tpu_custom_call.1} parent=11 // pred_check
          %p470 = pneg %p57
        $region14: #{tpu_custom_call.1} parent=11 // pred_check_branch
          %472 = sbr.rel (%p470) target = $region16
        $region15: #{tpu_custom_call.1} parent=11 // pred_region
          _
        $region16: #{tpu_custom_call.1} parent=11 // pred_fallthru
          _
        // Predicated region
        $region17: #{tpu_custom_call.1} parent=11 // pred_check
          %p473 = pneg %p78
        $region18: #{tpu_custom_call.1} parent=11 // pred_check_branch
          %475 = sbr.rel (%p473) target = $region20
        $region19: #{tpu_custom_call.1} parent=11 // pred_region
          _
        $region20: #{tpu_custom_call.1} parent=11 // pred_fallthru
          _
        // Predicated region
        $region21: #{tpu_custom_call.1} parent=11 // pred_check
          %p476 = pneg %p99
        $region22: #{tpu_custom_call.1} parent=11 // pred_check_branch
          %478 = sbr.rel (%p476) target = $region24
        $region23: #{tpu_custom_call.1} parent=11 // pred_region
          _
        $region24: #{tpu_custom_call.1} parent=11 // pred_fallthru
          _
        // Predicated region
        $region25: #{tpu_custom_call.1} parent=11 // pred_check
          %p479 = pneg %p172
        $region26: #{tpu_custom_call.1} parent=11 // pred_check_branch
          %481 = sbr.rel (%p479) target = $region28
        $region27: #{tpu_custom_call.1} parent=11 // pred_region
          _
        $region28: #{tpu_custom_call.1} parent=11 // pred_fallthru
          _
        // Predicated region
        $region29: #{tpu_custom_call.1} parent=11 // pred_check
          %p482 = pneg %p193
        $region30: #{tpu_custom_call.1} parent=11 // pred_check_branch
          %484 = sbr.rel (%p482) target = $region32
        $region31: #{tpu_custom_call.1} parent=11 // pred_region
          _
        $region32: #{tpu_custom_call.1} parent=11 // pred_fallthru
          _
        // Predicated region
        $region33: #{tpu_custom_call.1} parent=11 // pred_check
          %p485 = pneg %p214
        $region34: #{tpu_custom_call.1} parent=11 // pred_check_branch
          %487 = sbr.rel (%p485) target = $region36
        $region35: #{tpu_custom_call.1} parent=11 // pred_region
          %489 = vsyncadd [#allocation6], 0
          %s490 = sshll.u32 %s7, 4
          %s491 = int_to_ptr.hbm [resolvable:$true] %s490
          %s492 = sshll.u32 [#allocation5], 4
          %s493 = int_to_ptr.vmem [resolvable:$true] %s492
          %498 = dma.hbm_to_vmem [thread:$0]  %s491, 512, %s493, [#allocation6], 64, 64, 4
        $region36: #{tpu_custom_call.1} parent=11 // pred_fallthru
          _
        // Predicated region
        $region37: #{tpu_custom_call.1} parent=11 // pred_check
          %p499 = pneg %p235
        $region38: #{tpu_custom_call.1} parent=11 // pred_check_branch
          %501 = sbr.rel (%p499) target = $region40
        $region39: #{tpu_custom_call.1} parent=11 // pred_region
          %503 = vsyncadd [#allocation6], 0
          %s505 = sshll.u32 %s8, 4
          %s506 = int_to_ptr.hbm [resolvable:$true] %s505
          %s507 = sshll.u32 [#allocation7], 4
          %s508 = int_to_ptr.vmem [resolvable:$true] %s507
          %510 = dma.hbm_to_vmem [thread:$0]  %s506, 16, %s508, [#allocation6]
        $region40: #{tpu_custom_call.1} parent=11 // pred_fallthru
          _
        // Predicated region
        $region41: #{tpu_custom_call.1} parent=11 // pred_check
          %p511 = pneg %p256
        $region42: #{tpu_custom_call.1} parent=11 // pred_check_branch
          %513 = sbr.rel (%p511) target = $region44
        $region43: #{tpu_custom_call.1} parent=11 // pred_region
          _
        $region44: #{tpu_custom_call.1} parent=11 // pred_fallthru
          _
        // Predicated region
        $region45: #{tpu_custom_call.1} parent=11 // pred_check
          %p514 = pneg %p277
        $region46: #{tpu_custom_call.1} parent=11 // pred_check_branch
          %516 = sbr.rel (%p514) target = $region48
        $region47: #{tpu_custom_call.1} parent=11 // pred_region
          _
        $region48: #{tpu_custom_call.1} parent=11 // pred_fallthru
          _
        // Predicated region
        $region49: #{tpu_custom_call.1} parent=11 // pred_check
          %p517 = pneg %p298
        $region50: #{tpu_custom_call.1} parent=11 // pred_check_branch
          %519 = sbr.rel (%p517) target = $region52
        $region51: #{tpu_custom_call.1} parent=11 // pred_region
          _
        $region52: #{tpu_custom_call.1} parent=11 // pred_fallthru
          _
        // Predicated region
        $region53: #{tpu_custom_call.1} parent=11 // pred_check
          %p520 = pneg %p319
        $region54: #{tpu_custom_call.1} parent=11 // pred_check_branch
          %522 = sbr.rel (%p520) target = $region56
        $region55: #{tpu_custom_call.1} parent=11 // pred_region
          _
        $region56: #{tpu_custom_call.1} parent=11 // pred_fallthru
          _
        // Predicated region
        $region57: #{tpu_custom_call.1} parent=11 // pred_check
          %p523 = pneg %p340
        $region58: #{tpu_custom_call.1} parent=11 // pred_check_branch
          %525 = sbr.rel (%p523) target = $region60
        $region59: #{tpu_custom_call.1} parent=11 // pred_region
          %527 = vsyncadd [#allocation9], 0
          %s528 = sshll.u32 %s13, 4
          %s529 = int_to_ptr.hbm [resolvable:$true] %s528
          %s530 = sshll.u32 [#allocation8], 4
          %s531 = int_to_ptr.vmem [resolvable:$true] %s530
          %536 = dma.hbm_to_vmem [thread:$0]  %s529, 1024, %s531, [#allocation9], 64, 64, 4
        $region60: #{tpu_custom_call.1} parent=11 // pred_fallthru
          _
        // Predicated region
        $region61: #{tpu_custom_call.1} parent=11 // pred_check
          %p537 = pneg %p361
        $region62: #{tpu_custom_call.1} parent=11 // pred_check_branch
          %539 = sbr.rel (%p537) target = $region64
        $region63: #{tpu_custom_call.1} parent=11 // pred_region
          _
        $region64: #{tpu_custom_call.1} parent=11 // pred_fallthru
          _
        // Predicated region
        $region65: #{tpu_custom_call.1} parent=11 // pred_check
          %p540 = pneg %p382
        $region66: #{tpu_custom_call.1} parent=11 // pred_check_branch
          %542 = sbr.rel (%p540) target = $region68
        $region67: #{tpu_custom_call.1} parent=11 // pred_region
          %544 = vsyncadd [#allocation9], 0
          %s545 = sshll.u32 %s15, 4
          %s546 = int_to_ptr.hbm [resolvable:$true] %s545
          %s547 = sshll.u32 [#allocation10], 4
          %s548 = int_to_ptr.vmem [resolvable:$true] %s547
          %553 = dma.hbm_to_vmem [thread:$0]  %s546, 1024, %s548, [#allocation9], 64, 64, 4
        $region68: #{tpu_custom_call.1} parent=11 // pred_fallthru
          _
        // Predicated region
        $region69: #{tpu_custom_call.1} parent=11 // pred_check
          %p554 = pneg %p403
        $region70: #{tpu_custom_call.1} parent=11 // pred_check_branch
          %556 = sbr.rel (%p554) target = $region72
        $region71: #{tpu_custom_call.1} parent=11 // pred_region
          _
        $region72: #{tpu_custom_call.1} parent=11 // pred_fallthru
          _
      $region12: #{tpu_custom_call.1} parent=5 // pred_fallthru
        _
      %p557 = scmp.lt.s32.totalorder %s36, 4
      // Predicated region
      $region73: #{tpu_custom_call.1} parent=5 // pred_check
        %p558 = pneg %p557
      $region74: #{tpu_custom_call.1} parent=5 // pred_check_branch
        %560 = sbr.rel (%p558) target = $region76
      $region75: #{tpu_custom_call.1} parent=5 // pred_region
        // Predicated region
        $region77: #{tpu_custom_call.1} parent=75 // pred_check
          %p561 = pneg %p119
        $region78: #{tpu_custom_call.1} parent=75 // pred_check_branch
          %563 = sbr.rel (%p561) target = $region80
        $region79: #{tpu_custom_call.1} parent=75 // pred_region
          %p564 = scmp.lt.s32.totalorder %s36, 3
          %s565 = scalar_select %p564, %s36, 3
          %s566 = smul.addr %s565, 8
          %s567 = scalar_lea.vmem %s3, %s566
        $region80: #{tpu_custom_call.1} parent=75 // pred_fallthru
          _
        // Predicated region
        $region81: #{tpu_custom_call.1} parent=75 // pred_check
          %p568 = pneg %p145
        $region82: #{tpu_custom_call.1} parent=75 // pred_check_branch
          %570 = sbr.rel (%p568) target = $region84
        $region83: #{tpu_custom_call.1} parent=75 // pred_region
          %s571 = sand.u32 %s135, 1
          %s572 = scalar_lea.sflag [#allocation3], %s571
          %s573 = sand.u32 %s135, 1
          %s574 = smul.addr %s573, 56
          %s575 = scalar_lea.vmem [#allocation2], %s574
          %577 = vsyncadd %s572, 0
          %s578 = smul.addr %s36, 7
          %s579 = smul.addr %s578, 8
          %s580 = scalar_lea.hbm %s4, %s579
          %s581 = sshll.u32 %s580, 4
          %s582 = int_to_ptr.hbm [resolvable:$true] %s581
          %s583 = sshll.u32 %s575, 4
          %s584 = int_to_ptr.vmem [resolvable:$true] %s583
          %589 = dma.hbm_to_vmem [thread:$0]  %s582, 896, %s584, %s572, 128, 128, 8
        $region84: #{tpu_custom_call.1} parent=75 // pred_fallthru
          _
      $region76: #{tpu_custom_call.1} parent=5 // pred_fallthru
        _
      %p590 = scmp.le.s32.totalorder 1, %s36
      %p591 = scmp.lt.s32.totalorder %s36, 5
      %p592 = pnand %p590, %p591
      %p593 = pneg %p592
      // Predicated region
      $region85: #{tpu_custom_call.1} parent=5 // pred_check
        _
      $region86: #{tpu_custom_call.1} parent=5 // pred_check_branch
        %595 = sbr.rel (%p592) target = $region88
      $region87: #{tpu_custom_call.1} parent=5 // pred_region
        %s596 = ssub.s32 %s36, 1
        %s597 = sand.u32 %s138, 1
        %s598 = scalar_lea.sflag [#allocation3], %s597
        %s599 = sand.u32 %s138, 1
        %s600 = smul.addr %s599, 56
        %s601 = scalar_lea.vmem [#allocation2], %s600
        // Predicated region
        $region89: #{tpu_custom_call.1} parent=87 // pred_check
          %p602 = pneg %p151
        $region90: #{tpu_custom_call.1} parent=87 // pred_check_branch
          %604 = sbr.rel (%p602) target = $region92
        $region91: #{tpu_custom_call.1} parent=87 // pred_region
          %606 = dma.done %s598, 896
        $region92: #{tpu_custom_call.1} parent=87 // pred_fallthru
          _
        // Predicated region
        $region93: #{tpu_custom_call.1} parent=87 // pred_check
          %p607 = pneg %p214
        $region94: #{tpu_custom_call.1} parent=87 // pred_check_branch
          %609 = sbr.rel (%p607) target = $region96
        $region95: #{tpu_custom_call.1} parent=87 // pred_region
          %611 = dma.done [#allocation6], 512
        $region96: #{tpu_custom_call.1} parent=87 // pred_fallthru
          _
        // Predicated region
        $region97: #{tpu_custom_call.1} parent=87 // pred_check
          %p612 = pneg %p235
        $region98: #{tpu_custom_call.1} parent=87 // pred_check_branch
          %614 = sbr.rel (%p612) target = $region100
        $region99: #{tpu_custom_call.1} parent=87 // pred_region
          %616 = dma.done [#allocation6], 16
        $region100: #{tpu_custom_call.1} parent=87 // pred_fallthru
          _
        // Predicated region
        $region101: #{tpu_custom_call.1} parent=87 // pred_check
          %p617 = pneg %p340
        $region102: #{tpu_custom_call.1} parent=87 // pred_check_branch
          %619 = sbr.rel (%p617) target = $region104
        $region103: #{tpu_custom_call.1} parent=87 // pred_region
          %621 = dma.done [#allocation9], 1024
        $region104: #{tpu_custom_call.1} parent=87 // pred_fallthru
          _
        // Predicated region
        $region105: #{tpu_custom_call.1} parent=87 // pred_check
          %p622 = pneg %p382
        $region106: #{tpu_custom_call.1} parent=87 // pred_check_branch
          %624 = sbr.rel (%p622) target = $region108
        $region107: #{tpu_custom_call.1} parent=87 // pred_region
          %626 = dma.done [#allocation9], 1024
        $region108: #{tpu_custom_call.1} parent=87 // pred_fallthru
          _
        %p627 = pneg %p57
        %p628 = pneg %p54
        %p629 = pneg %p78
        %p630 = pneg %p75
        %p631 = pneg %p99
        %p632 = pneg %p96
        %p633 = scmp.lt.s32.totalorder %s41, 3
        %s634 = scalar_select %p633, %s41, 3
        %s635 = smul.addr %s634, 8
        %s636 = scalar_lea.vmem %s3, %s635
        %p637 = pneg %p125
        %p638 = pneg %p122
        %s639 = sand.u32 %s138, 1
        %s640 = scalar_lea.sflag [#allocation3], %s639
        %s641 = sand.u32 %s138, 1
        %s642 = smul.addr %s641, 56
        %s643 = scalar_lea.vmem [#allocation2], %s642
        %p644 = pneg %p151
        %p645 = pneg %p148
        %p646 = pneg %p172
        %p647 = pneg %p169
        %p648 = pneg %p193
        %p649 = pneg %p190
        %p650 = pneg %p214
        %p651 = pneg %p211
        %p652 = pneg %p235
        %p653 = pneg %p232
        %p654 = pneg %p256
        %p655 = pneg %p253
        %p656 = pneg %p277
        %p657 = pneg %p274
        %p658 = pneg %p298
        %p659 = pneg %p295
        %p660 = pneg %p319
        %p661 = pneg %p316
        %p662 = pneg %p340
        %p663 = pneg %p337
        %p664 = pneg %p361
        %p665 = pneg %p358
        %p666 = pneg %p382
        %p667 = pneg %p379
        %p668 = pneg %p403
        %p669 = pneg %p400
        %p670 = pneg %p429
        %p671 = pneg %p426
        %s672 = sand.u32 %s416, 1
        %s673 = scalar_lea.sflag [#allocation4], %s672
        %s674 = sand.u32 %s416, 1
        %s675 = smul.addr %s674, 8
        %s676 = scalar_lea.vmem [#allocation11], %s675
        %p677 = pneg %p455
        %p678 = pneg %p452
        %s679 = sand.u32 %s442, 1
        %s680 = scalar_lea.sflag [#allocation13], %s679
        %s681 = sand.u32 %s442, 1
        %s682 = smul.addr %s681, 56
        %s683 = scalar_lea.vmem [#allocation12], %s682
        %p684 = scmp.lt.s32.totalorder %s41, 3
        %s685 = scalar_select %p684, %s41, 3
        %s686 = smul.addr %s685, 8
        %s687 = scalar_lea.vmem %s3, %s686
        %v689 = vld [vmem:[%s687] sm:$0xff]
        %v690 = vld [vmem:[%s601] sm:$0xff]
        %v691 = vld [vmem:[%s601 + $0x8] sm:$0xff]
        %v692 = vld [vmem:[%s601 + $0x10] sm:$0xff]
        %v693 = vld [vmem:[%s601 + $0x18] sm:$0xff]
        %v694 = vld [vmem:[%s601 + $0x20] sm:$0xff]
        %v695 = vld [vmem:[%s601 + $0x28] sm:$0xff]
        %v696 = vld [vmem:[%s601 + $0x30] sm:$0xff]
        %v697 = vld [vmem:[%s0] sm:$0xff]
        %v698 = vld [vmem:[%s0 + $0x8] sm:$0xff]
        %v699 = vld [vmem:[%s0 + $0x10] sm:$0xff]
        %v700 = vld [vmem:[%s0 + $0x18] sm:$0xff]
        %v701 = vld [vmem:[%s0 + $0x20] sm:$0xff]
        %v702 = vld [vmem:[%s0 + $0x28] sm:$0xff]
        %v703 = vld [vmem:[%s0 + $0x30] sm:$0xff]
        %v704 = vld [vmem:[%s1] sm:$0xff]
        %v705 = vld [vmem:[%s1 + $0x8] sm:$0xff]
        %v706 = vld [vmem:[%s1 + $0x10] sm:$0xff]
        %v707 = vld [vmem:[%s1 + $0x18] sm:$0xff]
        %v708 = vld [vmem:[%s1 + $0x20] sm:$0xff]
        %v709 = vld [vmem:[%s1 + $0x28] sm:$0xff]
        %v710 = vld [vmem:[%s1 + $0x30] sm:$0xff]
        %v711 = vld [vmem:[%s2] sm:$0x1]
        %v712 = vlaneseq
        %v713 = vand.u32 %v712, 127
        %714 = vset.pattern.permute.xlu0 0
        %715 = vperm.xlu0 %714, %v697
        %v716 = vpop.permute.xlu0 %715
        %717 = vset.pattern.permute.xlu0 0
        %718 = vperm.xlu0 %717, %v698
        %v719 = vpop.permute.xlu0 %718
        %720 = vset.pattern.permute.xlu0 0
        %721 = vperm.xlu0 %720, %v699
        %v722 = vpop.permute.xlu0 %721
        %723 = vset.pattern.permute.xlu0 0
        %724 = vperm.xlu0 %723, %v700
        %v725 = vpop.permute.xlu0 %724
        %726 = vset.pattern.permute.xlu0 0
        %727 = vperm.xlu0 %726, %v701
        %v728 = vpop.permute.xlu0 %727
        %729 = vset.pattern.permute.xlu0 0
        %730 = vperm.xlu0 %729, %v702
        %v731 = vpop.permute.xlu0 %730
        %732 = vset.pattern.permute.xlu0 0
        %733 = vperm.xlu0 %732, %v703
        %v734 = vpop.permute.xlu0 %733
        %vm735 = vcmp.eq.s32.totalorder %v713, %v716
        %vm736 = vcmp.eq.s32.totalorder %v713, %v719
        %vm737 = vcmp.eq.s32.totalorder %v713, %v722
        %vm738 = vcmp.eq.s32.totalorder %v713, %v725
        %vm739 = vcmp.eq.s32.totalorder %v713, %v728
        %vm740 = vcmp.eq.s32.totalorder %v713, %v731
        %vm741 = vcmp.eq.s32.totalorder %v713, %v734
        %v742 = vsel %vm735, 1, 0
        %v743 = vsel %vm736, 1, 0
        %v744 = vsel %vm737, 1, 0
        %v745 = vsel %vm738, 1, 0
        %v746 = vsel %vm739, 1, 0
        %v747 = vsel %vm740, 1, 0
        %v748 = vsel %vm741, 1, 0
        %v749 = vcvt.s32.f32 %v742
        %v750 = vcvt.s32.f32 %v743
        %v751 = vcvt.s32.f32 %v744
        %v752 = vcvt.s32.f32 %v745
        %v753 = vcvt.s32.f32 %v746
        %v754 = vcvt.s32.f32 %v747
        %v755 = vcvt.s32.f32 %v748
        %v756 = vpack.c.bf16 %v750, %v749
        %v757 = vpack.c.bf16 %v752, %v751
        %v758 = vpack.c.bf16 %v754, %v753
        %v759 = vpack.c.bf16 %v755, %v755
        %760 = vset.pattern.permute.xlu0 0
        %761 = vperm.xlu0 %760, %v704
        %v762 = vpop.permute.xlu0 %761
        %763 = vset.pattern.permute.xlu0 0
        %764 = vperm.xlu0 %763, %v705
        %v765 = vpop.permute.xlu0 %764
        %766 = vset.pattern.permute.xlu0 0
        %767 = vperm.xlu0 %766, %v706
        %v768 = vpop.permute.xlu0 %767
        %769 = vset.pattern.permute.xlu0 0
        %770 = vperm.xlu0 %769, %v707
        %v771 = vpop.permute.xlu0 %770
        %772 = vset.pattern.permute.xlu0 0
        %773 = vperm.xlu0 %772, %v708
        %v774 = vpop.permute.xlu0 %773
        %775 = vset.pattern.permute.xlu0 0
        %776 = vperm.xlu0 %775, %v709
        %v777 = vpop.permute.xlu0 %776
        %778 = vset.pattern.permute.xlu0 0
        %779 = vperm.xlu0 %778, %v710
        %v780 = vpop.permute.xlu0 %779
        %vm781 = vcmp.eq.s32.totalorder %v713, %v762
        %vm782 = vcmp.eq.s32.totalorder %v713, %v765
        %vm783 = vcmp.eq.s32.totalorder %v713, %v768
        %vm784 = vcmp.eq.s32.totalorder %v713, %v771
        %vm785 = vcmp.eq.s32.totalorder %v713, %v774
        %vm786 = vcmp.eq.s32.totalorder %v713, %v777
        %vm787 = vcmp.eq.s32.totalorder %v713, %v780
        %v788 = vsel %vm781, 1, 0
        %v789 = vsel %vm782, 1, 0
        %v790 = vsel %vm783, 1, 0
        %v791 = vsel %vm784, 1, 0
        %v792 = vsel %vm785, 1, 0
        %v793 = vsel %vm786, 1, 0
        %v794 = vsel %vm787, 1, 0
        %v795 = vcvt.s32.f32 %v788
        %v796 = vcvt.s32.f32 %v789
        %v797 = vcvt.s32.f32 %v790
        %v798 = vcvt.s32.f32 %v791
        %v799 = vcvt.s32.f32 %v792
        %v800 = vcvt.s32.f32 %v793
        %v801 = vcvt.s32.f32 %v794
        %v802 = vpack.c.bf16 %v796, %v795
        %v803 = vpack.c.bf16 %v798, %v797
        %v804 = vpack.c.bf16 %v800, %v799
        %v805 = vpack.c.bf16 %v801, %v801
        %v806 = vlaneseq
        %v807 = vshrl.u32 %v806, 7
        %v808 = vperm.slane %v711, 0
        %vm809 = vcmp.eq.s32.totalorder %v807, %v808
        %v810 = vsel %vm809, 1, 0
        %v811 = vcvt.s32.f32 %v810
        %v812 = vpack.c.bf16 %v689, %v689
        %v813 = vld [vmem:[%s5] sm:$0xf]
        %v814 = vld [vmem:[%s5 + $0x4] sm:$0xf]
        %v817 = vunpack.c.l.b16 %v813
        %v818 = vunpack.c.l.b16 %v814
        %v819 = vpack.c.b16 %v818, %v817
        %vm821 = vcmask 130048
        %v823 = vsel %vm821, %v812, 0
        %825 = vmatpush.bf16.msra.mxu0 0
        %826 = vmatpush.bf16.msra.mxu0 0
        %827 = vmatpush.bf16.msra.mxu0 0
        %828 = vmatpush.bf16.msra.mxu0 0
        %829 = vmatpush.bf16.msra.mxu0 0
        %830 = vmatpush.bf16.msra.mxu0 0
        %831 = vmatpush.bf16.msra.mxu0 0
        %832 = vmatpush.bf16.msra.mxu0 %v819
        %833 = vmatmul.bf16.gmra.mxu0 %v823
        %v834 = vpop.f32.mrf.mxu0
        %v835 = vadd.f32 0.0, %v834
        %v836 = vpop.f32.mrf.mxu0
        %837 = vdwg.mxu0
        %v838 = vld [vmem:[%s6] sm:$0xf]
        %v839 = vld [vmem:[%s6 + $0x4] sm:$0xf]
        %v842 = vunpack.c.l.b16 %v838
        %v843 = vunpack.c.l.b16 %v839
        %v844 = vpack.c.b16 %v843, %v842
        %846 = vmatpush.bf16.msra.mxu0 0
        %847 = vmatpush.bf16.msra.mxu0 0
        %848 = vmatpush.bf16.msra.mxu0 0
        %849 = vmatpush.bf16.msra.mxu0 0
        %850 = vmatpush.bf16.msra.mxu0 0
        %851 = vmatpush.bf16.msra.mxu0 0
        %852 = vmatpush.bf16.msra.mxu0 0
        %853 = vmatpush.bf16.msra.mxu0 %v844
        %854 = vmatmul.bf16.gmra.mxu0 %v823
        %v855 = vpop.f32.mrf.mxu0
        %v856 = vadd.f32 0.0, %v855
        %v857 = vpop.f32.mrf.mxu0
        %858 = vdwg.mxu0
        %v859 = vpack.c.bf16 %v691, %v690
        %v860 = vpack.c.bf16 %v693, %v692
        %v861 = vpack.c.bf16 %v695, %v694
        %v862 = vpack.c.bf16 %v696, %v696
        %v863 = vld [vmem:[#allocation5] sm:$0xf]
        %v864 = vld [vmem:[#allocation5 + $0x4] sm:$0xf]
        %v865 = vld [vmem:[#allocation5 + $0x8] sm:$0xf]
        %v866 = vld [vmem:[#allocation5 + $0xc] sm:$0xf]
        %v867 = vld [vmem:[#allocation5 + $0x10] sm:$0xf]
        %v868 = vld [vmem:[#allocation5 + $0x14] sm:$0xf]
        %v869 = vld [vmem:[#allocation5 + $0x18] sm:$0xf]
        %v870 = vld [vmem:[#allocation5 + $0x1c] sm:$0xf]
        %v879 = vunpack.c.l.b16 %v863
        %v880 = vunpack.c.l.b16 %v864
        %v881 = vunpack.c.l.b16 %v865
        %v882 = vunpack.c.l.b16 %v866
        %v883 = vunpack.c.l.b16 %v867
        %v884 = vunpack.c.l.b16 %v868
        %v885 = vunpack.c.l.b16 %v869
        %v886 = vunpack.c.l.b16 %v870
        %v887 = vpack.c.b16 %v880, %v879
        %v888 = vpack.c.b16 %v882, %v881
        %v889 = vpack.c.b16 %v884, %v883
        %v890 = vpack.c.b16 %v886, %v885
        %vm895 = vcmask 523264
        %v897 = vsel %vm895, %v859, 0
        %v900 = vsel %vm895, %v860, 0
        %v903 = vsel %vm895, %v861, 0
        %v906 = vsel %vm895, %v862, 0
        %908 = vmatpush.bf16.msra.mxu0 0
        %909 = vmatpush.bf16.msra.mxu0 0
        %910 = vmatpush.bf16.msra.mxu0 0
        %911 = vmatpush.bf16.msra.mxu0 0
        %912 = vmatpush.bf16.msra.mxu0 %v890
        %913 = vmatpush.bf16.msra.mxu0 %v889
        %914 = vmatpush.bf16.msra.mxu0 %v888
        %915 = vmatpush.bf16.msra.mxu0 %v887
        %916 = vmatmul.bf16.gmra.mxu0 %v897
        %v917 = vpop.f32.mrf.mxu0
        %v918 = vadd.f32 0.0, %v917
        %v919 = vpop.f32.mrf.mxu0
        %v920 = vadd.f32 0.0, %v919
        %921 = vmatmul.bf16.gmra.mxu0 %v900
        %v922 = vpop.f32.mrf.mxu0
        %v923 = vadd.f32 0.0, %v922
        %v924 = vpop.f32.mrf.mxu0
        %v925 = vadd.f32 0.0, %v924
        %926 = vmatmul.bf16.gmra.mxu0 %v903
        %v927 = vpop.f32.mrf.mxu0
        %v928 = vadd.f32 0.0, %v927
        %v929 = vpop.f32.mrf.mxu0
        %v930 = vadd.f32 0.0, %v929
        %931 = vmatmul.bf16.gmra.mxu0 %v906
        %v932 = vpop.f32.mrf.mxu0
        %v933 = vadd.f32 0.0, %v932
        %v934 = vpop.f32.mrf.mxu0
        %935 = vdwg.mxu0
        %v936 = vpack.c.bf16 %v835, %v835
        %v937 = vpack.c.bf16 %v856, %v856
        %vm938 = vcmask 64512
        %v940 = vsel %vm938, %v802, 0
        %v943 = vsel %vm938, %v803, 0
        %v946 = vsel %vm938, %v804, 0
        %v949 = vsel %vm938, %v805, 0
        %vm951 = vcmask 1043456
        %v953 = vsel %vm951, %v937, 0
        %955 = vmatpush.bf16.msra.mxu0 0
        %956 = vmatpush.bf16.msra.mxu0 0
        %957 = vmatpush.bf16.msra.mxu0 0
        %958 = vmatpush.bf16.msra.mxu0 0
        %959 = vmatpush.bf16.msra.mxu0 0
        %960 = vmatpush.bf16.msra.mxu0 0
        %961 = vmatpush.bf16.msra.mxu0 0
        %962 = vmatpush.bf16.msra.mxu0 %v953
        %963 = vmatmul.bf16.gmra.mxu0 %v940
        %v964 = vpop.f32.mrf.mxu0
        %v965 = vadd.f32 0.0, %v964
        %v966 = vpop.f32.mrf.mxu0
        %v967 = vadd.f32 0.0, %v966
        %968 = vmatmul.bf16.gmra.mxu0 %v943
        %v969 = vpop.f32.mrf.mxu0
        %v970 = vadd.f32 0.0, %v969
        %v971 = vpop.f32.mrf.mxu0
        %v972 = vadd.f32 0.0, %v971
        %973 = vmatmul.bf16.gmra.mxu0 %v946
        %v974 = vpop.f32.mrf.mxu0
        %v975 = vadd.f32 0.0, %v974
        %v976 = vpop.f32.mrf.mxu0
        %v977 = vadd.f32 0.0, %v976
        %978 = vmatmul.bf16.gmra.mxu0 %v949
        %v979 = vpop.f32.mrf.mxu0
        %v980 = vadd.f32 0.0, %v979
        %v981 = vpop.f32.mrf.mxu0
        %982 = vdwg.mxu0
        %v984 = vsel %vm938, %v756, 0
        %v987 = vsel %vm938, %v757, 0
        %v990 = vsel %vm938, %v758, 0
        %v993 = vsel %vm938, %v759, 0
        %v996 = vsel %vm951, %v936, 0
        %998 = vmatpush.bf16.msra.mxu0 0
        %999 = vmatpush.bf16.msra.mxu0 0
        %1000 = vmatpush.bf16.msra.mxu0 0
        %1001 = vmatpush.bf16.msra.mxu0 0
        %1002 = vmatpush.bf16.msra.mxu0 0
        %1003 = vmatpush.bf16.msra.mxu0 0
        %1004 = vmatpush.bf16.msra.mxu0 0
        %1005 = vmatpush.bf16.msra.mxu0 %v996
        %1006 = vmatmul.bf16.gmra.mxu0 %v984
        %v1007 = vpop.f32.mrf.mxu0
        %v1008 = vadd.f32 %v965, %v1007
        %v1009 = vpop.f32.mrf.mxu0
        %v1010 = vadd.f32 %v967, %v1009
        %1011 = vmatmul.bf16.gmra.mxu0 %v987
        %v1012 = vpop.f32.mrf.mxu0
        %v1013 = vadd.f32 %v970, %v1012
        %v1014 = vpop.f32.mrf.mxu0
        %v1015 = vadd.f32 %v972, %v1014
        %1016 = vmatmul.bf16.gmra.mxu0 %v990
        %v1017 = vpop.f32.mrf.mxu0
        %v1018 = vadd.f32 %v975, %v1017
        %v1019 = vpop.f32.mrf.mxu0
        %v1020 = vadd.f32 %v977, %v1019
        %1021 = vmatmul.bf16.gmra.mxu0 %v993
        %v1022 = vpop.f32.mrf.mxu0
        %v1023 = vadd.f32 %v980, %v1022
        %v1024 = vpop.f32.mrf.mxu0
        %1025 = vdwg.mxu0
        %v1026 = vadd.f32 %v1008, %v918
        %v1027 = vadd.f32 %v1010, %v920
        %v1028 = vadd.f32 %v1013, %v923
        %v1029 = vadd.f32 %v1015, %v925
        %v1030 = vadd.f32 %v1018, %v928
        %v1031 = vadd.f32 %v1020, %v930
        %v1032 = vadd.f32 %v1023, %v933
        %v1033 = vld [vmem:[#allocation7] sm:$0x1]
        %v1035 = vperm.slane %v1033, 0
        %v1037 = vadd.f32 %v1026, %v1035
        %v1038 = vadd.f32 %v1027, %v1035
        %v1039 = vadd.f32 %v1028, %v1035
        %v1040 = vadd.f32 %v1029, %v1035
        %v1041 = vadd.f32 %v1030, %v1035
        %v1042 = vadd.f32 %v1031, %v1035
        %v1043 = vadd.f32 %v1032, %v1035
        %v1044 = vxor.u32 %v1037, 2147483648
        %v1045 = vxor.u32 %v1038, 2147483648
        %v1046 = vxor.u32 %v1039, 2147483648
        %v1047 = vxor.u32 %v1040, 2147483648
        %v1048 = vxor.u32 %v1041, 2147483648
        %v1049 = vxor.u32 %v1042, 2147483648
        %v1050 = vxor.u32 %v1043, 2147483648
        %v1051 = vmul.f32 %v1044, 1.442695
        %v1052 = vpow.pop %v1051
        %v1053 = vmul.f32 %v1045, 1.442695
        %v1054 = vpow.pop %v1053
        %v1055 = vmul.f32 %v1046, 1.442695
        %v1056 = vpow.pop %v1055
        %v1057 = vmul.f32 %v1047, 1.442695
        %v1058 = vpow.pop %v1057
        %v1059 = vmul.f32 %v1048, 1.442695
        %v1060 = vpow.pop %v1059
        %v1061 = vmul.f32 %v1049, 1.442695
        %v1062 = vpow.pop %v1061
        %v1063 = vmul.f32 %v1050, 1.442695
        %v1064 = vpow.pop %v1063
        %v1065 = vadd.f32 %v1052, 1.0
        %v1066 = vadd.f32 %v1054, 1.0
        %v1067 = vadd.f32 %v1056, 1.0
        %v1068 = vadd.f32 %v1058, 1.0
        %v1069 = vadd.f32 %v1060, 1.0
        %v1070 = vadd.f32 %v1062, 1.0
        %v1071 = vadd.f32 %v1064, 1.0
        %v1072 = vrcp.pop %v1065
        %v1073 = vmul.f32 %v1065, %v1072
        %v1074 = vsub.f32 1.0, %v1073
        %v1075 = vmul.f32 %v1072, %v1074
        %v1076 = vadd.f32 %v1072, %v1075
        %vm1077 = vweird.f32 %v1065
        %vm1078 = vweird.f32 %v1072
        %vm1079 = vmor %vm1077, %vm1078
        %v1080 = vsel %vm1079, %v1072, %v1076
        %v1081 = vand.u32 2147483647, %v1065
        %vm1082 = vcmp.eq.f32.partialorder %v1081, 8.507059e+37
        %v1083 = vand.u32 %v1065, 2147483648
        %v1084 = vor.u32 1.1754944e-38, %v1083
        %v1085 = vsel %vm1082, %v1084, %v1080
        %v1086 = vmul.f32 1.0, %v1085
        %v1087 = vrcp.pop %v1066
        %v1088 = vmul.f32 %v1066, %v1087
        %v1089 = vsub.f32 1.0, %v1088
        %v1090 = vmul.f32 %v1087, %v1089
        %v1091 = vadd.f32 %v1087, %v1090
        %vm1092 = vweird.f32 %v1066
        %vm1093 = vweird.f32 %v1087
        %vm1094 = vmor %vm1092, %vm1093
        %v1095 = vsel %vm1094, %v1087, %v1091
        %v1096 = vand.u32 2147483647, %v1066
        %vm1097 = vcmp.eq.f32.partialorder %v1096, 8.507059e+37
        %v1098 = vand.u32 %v1066, 2147483648
        %v1099 = vor.u32 1.1754944e-38, %v1098
        %v1100 = vsel %vm1097, %v1099, %v1095
        %v1101 = vmul.f32 1.0, %v1100
        %v1102 = vrcp.pop %v1067
        %v1103 = vmul.f32 %v1067, %v1102
        %v1104 = vsub.f32 1.0, %v1103
        %v1105 = vmul.f32 %v1102, %v1104
        %v1106 = vadd.f32 %v1102, %v1105
        %vm1107 = vweird.f32 %v1067
        %vm1108 = vweird.f32 %v1102
        %vm1109 = vmor %vm1107, %vm1108
        %v1110 = vsel %vm1109, %v1102, %v1106
        %v1111 = vand.u32 2147483647, %v1067
        %vm1112 = vcmp.eq.f32.partialorder %v1111, 8.507059e+37
        %v1113 = vand.u32 %v1067, 2147483648
        %v1114 = vor.u32 1.1754944e-38, %v1113
        %v1115 = vsel %vm1112, %v1114, %v1110
        %v1116 = vmul.f32 1.0, %v1115
        %v1117 = vrcp.pop %v1068
        %v1118 = vmul.f32 %v1068, %v1117
        %v1119 = vsub.f32 1.0, %v1118
        %v1120 = vmul.f32 %v1117, %v1119
        %v1121 = vadd.f32 %v1117, %v1120
        %vm1122 = vweird.f32 %v1068
        %vm1123 = vweird.f32 %v1117
        %vm1124 = vmor %vm1122, %vm1123
        %v1125 = vsel %vm1124, %v1117, %v1121
        %v1126 = vand.u32 2147483647, %v1068
        %vm1127 = vcmp.eq.f32.partialorder %v1126, 8.507059e+37
        %v1128 = vand.u32 %v1068, 2147483648
        %v1129 = vor.u32 1.1754944e-38, %v1128
        %v1130 = vsel %vm1127, %v1129, %v1125
        %v1131 = vmul.f32 1.0, %v1130
        %v1132 = vrcp.pop %v1069
        %v1133 = vmul.f32 %v1069, %v1132
        %v1134 = vsub.f32 1.0, %v1133
        %v1135 = vmul.f32 %v1132, %v1134
        %v1136 = vadd.f32 %v1132, %v1135
        %vm1137 = vweird.f32 %v1069
        %vm1138 = vweird.f32 %v1132
        %vm1139 = vmor %vm1137, %vm1138
        %v1140 = vsel %vm1139, %v1132, %v1136
        %v1141 = vand.u32 2147483647, %v1069
        %vm1142 = vcmp.eq.f32.partialorder %v1141, 8.507059e+37
        %v1143 = vand.u32 %v1069, 2147483648
        %v1144 = vor.u32 1.1754944e-38, %v1143
        %v1145 = vsel %vm1142, %v1144, %v1140
        %v1146 = vmul.f32 1.0, %v1145
        %v1147 = vrcp.pop %v1070
        %v1148 = vmul.f32 %v1070, %v1147
        %v1149 = vsub.f32 1.0, %v1148
        %v1150 = vmul.f32 %v1147, %v1149
        %v1151 = vadd.f32 %v1147, %v1150
        %vm1152 = vweird.f32 %v1070
        %vm1153 = vweird.f32 %v1147
        %vm1154 = vmor %vm1152, %vm1153
        %v1155 = vsel %vm1154, %v1147, %v1151
        %v1156 = vand.u32 2147483647, %v1070
        %vm1157 = vcmp.eq.f32.partialorder %v1156, 8.507059e+37
        %v1158 = vand.u32 %v1070, 2147483648
        %v1159 = vor.u32 1.1754944e-38, %v1158
        %v1160 = vsel %vm1157, %v1159, %v1155
        %v1161 = vmul.f32 1.0, %v1160
        %v1162 = vrcp.pop %v1071
        %v1163 = vmul.f32 %v1071, %v1162
        %v1164 = vsub.f32 1.0, %v1163
        %v1165 = vmul.f32 %v1162, %v1164
        %v1166 = vadd.f32 %v1162, %v1165
        %vm1167 = vweird.f32 %v1071
        %vm1168 = vweird.f32 %v1162
        %vm1169 = vmor %vm1167, %vm1168
        %v1170 = vsel %vm1169, %v1162, %v1166
        %v1171 = vand.u32 2147483647, %v1071
        %vm1172 = vcmp.eq.f32.partialorder %v1171, 8.507059e+37
        %v1173 = vand.u32 %v1071, 2147483648
        %v1174 = vor.u32 1.1754944e-38, %v1173
        %v1175 = vsel %vm1172, %v1174, %v1170
        %v1176 = vmul.f32 1.0, %v1175
        %v1177 = vmul.f32 %v1037, %v1086
        %v1178 = vmul.f32 %v1038, %v1101
        %v1179 = vmul.f32 %v1039, %v1116
        %v1180 = vmul.f32 %v1040, %v1131
        %v1181 = vmul.f32 %v1041, %v1146
        %v1182 = vmul.f32 %v1042, %v1161
        %v1183 = vmul.f32 %v1043, %v1176
        %v1184 = vpack.c.bf16 %v1178, %v1177
        %v1185 = vpack.c.bf16 %v1180, %v1179
        %v1186 = vpack.c.bf16 %v1182, %v1181
        %v1187 = vpack.c.bf16 %v1183, %v1183
        %v1188 = vld [vmem:[%s9] sm:$0xf]
        %v1189 = vld [vmem:[%s9 + $0x4] sm:$0xf]
        %v1190 = vld [vmem:[%s9 + $0x8] sm:$0xf]
        %v1191 = vld [vmem:[%s9 + $0xc] sm:$0xf]
        %v1192 = vld [vmem:[%s9 + $0x10] sm:$0xf]
        %v1193 = vld [vmem:[%s9 + $0x14] sm:$0xf]
        %v1194 = vld [vmem:[%s9 + $0x18] sm:$0xf]
        %v1195 = vld [vmem:[%s9 + $0x1c] sm:$0xf]
        %v1196 = vld [vmem:[%s9 + $0x20] sm:$0xf]
        %v1197 = vld [vmem:[%s9 + $0x24] sm:$0xf]
        %v1198 = vld [vmem:[%s9 + $0x28] sm:$0xf]
        %v1199 = vld [vmem:[%s9 + $0x2c] sm:$0xf]
        %v1200 = vld [vmem:[%s9 + $0x30] sm:$0xf]
        %v1201 = vld [vmem:[%s9 + $0x34] sm:$0xf]
        %v1202 = vld [vmem:[%s9 + $0x38] sm:$0xf]
        %v1203 = vld [vmem:[%s9 + $0x3c] sm:$0xf]
        %v1204 = vld [vmem:[%s10] sm:$0x1]
        %v1206 = vperm.slane %v1204, 0
        %v1224 = vunpack.c.l.b16 %v1188
        %v1225 = vunpack.c.l.b16 %v1189
        %v1226 = vunpack.c.l.b16 %v1190
        %v1227 = vunpack.c.l.b16 %v1191
        %v1228 = vunpack.c.l.b16 %v1192
        %v1229 = vunpack.c.l.b16 %v1193
        %v1230 = vunpack.c.l.b16 %v1194
        %v1231 = vunpack.c.l.b16 %v1195
        %v1232 = vunpack.c.l.b16 %v1196
        %v1233 = vunpack.c.l.b16 %v1197
        %v1234 = vunpack.c.l.b16 %v1198
        %v1235 = vunpack.c.l.b16 %v1199
        %v1236 = vunpack.c.l.b16 %v1200
        %v1237 = vunpack.c.l.b16 %v1201
        %v1238 = vunpack.c.l.b16 %v1202
        %v1239 = vunpack.c.l.b16 %v1203
        %v1240 = vpack.c.b16 %v1225, %v1224
        %v1241 = vpack.c.b16 %v1227, %v1226
        %v1242 = vpack.c.b16 %v1229, %v1228
        %v1243 = vpack.c.b16 %v1231, %v1230
        %v1244 = vpack.c.b16 %v1233, %v1232
        %v1245 = vpack.c.b16 %v1235, %v1234
        %v1246 = vpack.c.b16 %v1237, %v1236
        %v1247 = vpack.c.b16 %v1239, %v1238
        %1256 = vmatpush.bf16.msra.mxu0 %v1247
        %1257 = vmatpush.bf16.msra.mxu0 %v1246
        %1258 = vmatpush.bf16.msra.mxu0 %v1245
        %1259 = vmatpush.bf16.msra.mxu0 %v1244
        %1260 = vmatpush.bf16.msra.mxu0 %v1243
        %1261 = vmatpush.bf16.msra.mxu0 %v1242
        %1262 = vmatpush.bf16.msra.mxu0 %v1241
        %1263 = vmatpush.bf16.msra.mxu0 %v1240
        %1264 = vmatmul.bf16.gmra.mxu0 %v1184
        %v1265 = vpop.f32.mrf.mxu0
        %v1266 = vadd.f32 %v1206, %v1265
        %v1267 = vpop.f32.mrf.mxu0
        %v1268 = vadd.f32 %v1206, %v1267
        %1269 = vmatmul.bf16.gmra.mxu0 %v1185
        %v1270 = vpop.f32.mrf.mxu0
        %v1271 = vadd.f32 %v1206, %v1270
        %v1272 = vpop.f32.mrf.mxu0
        %v1273 = vadd.f32 %v1206, %v1272
        %1274 = vmatmul.bf16.gmra.mxu0 %v1186
        %v1275 = vpop.f32.mrf.mxu0
        %v1276 = vadd.f32 %v1206, %v1275
        %v1277 = vpop.f32.mrf.mxu0
        %v1278 = vadd.f32 %v1206, %v1277
        %1279 = vmatmul.bf16.gmra.mxu0 %v1187
        %v1280 = vpop.f32.mrf.mxu0
        %v1281 = vadd.f32 %v1206, %v1280
        %v1282 = vpop.f32.mrf.mxu0
        %1283 = vdwg.mxu0
        %v1284 = vxor.u32 %v1266, 2147483648
        %v1285 = vxor.u32 %v1268, 2147483648
        %v1286 = vxor.u32 %v1271, 2147483648
        %v1287 = vxor.u32 %v1273, 2147483648
        %v1288 = vxor.u32 %v1276, 2147483648
        %v1289 = vxor.u32 %v1278, 2147483648
        %v1290 = vxor.u32 %v1281, 2147483648
        %v1291 = vmul.f32 %v1284, 1.442695
        %v1292 = vpow.pop %v1291
        %v1293 = vmul.f32 %v1285, 1.442695
        %v1294 = vpow.pop %v1293
        %v1295 = vmul.f32 %v1286, 1.442695
        %v1296 = vpow.pop %v1295
        %v1297 = vmul.f32 %v1287, 1.442695
        %v1298 = vpow.pop %v1297
        %v1299 = vmul.f32 %v1288, 1.442695
        %v1300 = vpow.pop %v1299
        %v1301 = vmul.f32 %v1289, 1.442695
        %v1302 = vpow.pop %v1301
        %v1303 = vmul.f32 %v1290, 1.442695
        %v1304 = vpow.pop %v1303
        %v1305 = vadd.f32 %v1292, 1.0
        %v1306 = vadd.f32 %v1294, 1.0
        %v1307 = vadd.f32 %v1296, 1.0
        %v1308 = vadd.f32 %v1298, 1.0
        %v1309 = vadd.f32 %v1300, 1.0
        %v1310 = vadd.f32 %v1302, 1.0
        %v1311 = vadd.f32 %v1304, 1.0
        %v1312 = vrcp.pop %v1305
        %v1313 = vmul.f32 %v1305, %v1312
        %v1314 = vsub.f32 1.0, %v1313
        %v1315 = vmul.f32 %v1312, %v1314
        %v1316 = vadd.f32 %v1312, %v1315
        %vm1317 = vweird.f32 %v1305
        %vm1318 = vweird.f32 %v1312
        %vm1319 = vmor %vm1317, %vm1318
        %v1320 = vsel %vm1319, %v1312, %v1316
        %v1321 = vand.u32 2147483647, %v1305
        %vm1322 = vcmp.eq.f32.partialorder %v1321, 8.507059e+37
        %v1323 = vand.u32 %v1305, 2147483648
        %v1324 = vor.u32 1.1754944e-38, %v1323
        %v1325 = vsel %vm1322, %v1324, %v1320
        %v1326 = vmul.f32 1.0, %v1325
        %v1327 = vrcp.pop %v1306
        %v1328 = vmul.f32 %v1306, %v1327
        %v1329 = vsub.f32 1.0, %v1328
        %v1330 = vmul.f32 %v1327, %v1329
        %v1331 = vadd.f32 %v1327, %v1330
        %vm1332 = vweird.f32 %v1306
        %vm1333 = vweird.f32 %v1327
        %vm1334 = vmor %vm1332, %vm1333
        %v1335 = vsel %vm1334, %v1327, %v1331
        %v1336 = vand.u32 2147483647, %v1306
        %vm1337 = vcmp.eq.f32.partialorder %v1336, 8.507059e+37
        %v1338 = vand.u32 %v1306, 2147483648
        %v1339 = vor.u32 1.1754944e-38, %v1338
        %v1340 = vsel %vm1337, %v1339, %v1335
        %v1341 = vmul.f32 1.0, %v1340
        %v1342 = vrcp.pop %v1307
        %v1343 = vmul.f32 %v1307, %v1342
        %v1344 = vsub.f32 1.0, %v1343
        %v1345 = vmul.f32 %v1342, %v1344
        %v1346 = vadd.f32 %v1342, %v1345
        %vm1347 = vweird.f32 %v1307
        %vm1348 = vweird.f32 %v1342
        %vm1349 = vmor %vm1347, %vm1348
        %v1350 = vsel %vm1349, %v1342, %v1346
        %v1351 = vand.u32 2147483647, %v1307
        %vm1352 = vcmp.eq.f32.partialorder %v1351, 8.507059e+37
        %v1353 = vand.u32 %v1307, 2147483648
        %v1354 = vor.u32 1.1754944e-38, %v1353
        %v1355 = vsel %vm1352, %v1354, %v1350
        %v1356 = vmul.f32 1.0, %v1355
        %v1357 = vrcp.pop %v1308
        %v1358 = vmul.f32 %v1308, %v1357
        %v1359 = vsub.f32 1.0, %v1358
        %v1360 = vmul.f32 %v1357, %v1359
        %v1361 = vadd.f32 %v1357, %v1360
        %vm1362 = vweird.f32 %v1308
        %vm1363 = vweird.f32 %v1357
        %vm1364 = vmor %vm1362, %vm1363
        %v1365 = vsel %vm1364, %v1357, %v1361
        %v1366 = vand.u32 2147483647, %v1308
        %vm1367 = vcmp.eq.f32.partialorder %v1366, 8.507059e+37
        %v1368 = vand.u32 %v1308, 2147483648
        %v1369 = vor.u32 1.1754944e-38, %v1368
        %v1370 = vsel %vm1367, %v1369, %v1365
        %v1371 = vmul.f32 1.0, %v1370
        %v1372 = vrcp.pop %v1309
        %v1373 = vmul.f32 %v1309, %v1372
        %v1374 = vsub.f32 1.0, %v1373
        %v1375 = vmul.f32 %v1372, %v1374
        %v1376 = vadd.f32 %v1372, %v1375
        %vm1377 = vweird.f32 %v1309
        %vm1378 = vweird.f32 %v1372
        %vm1379 = vmor %vm1377, %vm1378
        %v1380 = vsel %vm1379, %v1372, %v1376
        %v1381 = vand.u32 2147483647, %v1309
        %vm1382 = vcmp.eq.f32.partialorder %v1381, 8.507059e+37
        %v1383 = vand.u32 %v1309, 2147483648
        %v1384 = vor.u32 1.1754944e-38, %v1383
        %v1385 = vsel %vm1382, %v1384, %v1380
        %v1386 = vmul.f32 1.0, %v1385
        %v1387 = vrcp.pop %v1310
        %v1388 = vmul.f32 %v1310, %v1387
        %v1389 = vsub.f32 1.0, %v1388
        %v1390 = vmul.f32 %v1387, %v1389
        %v1391 = vadd.f32 %v1387, %v1390
        %vm1392 = vweird.f32 %v1310
        %vm1393 = vweird.f32 %v1387
        %vm1394 = vmor %vm1392, %vm1393
        %v1395 = vsel %vm1394, %v1387, %v1391
        %v1396 = vand.u32 2147483647, %v1310
        %vm1397 = vcmp.eq.f32.partialorder %v1396, 8.507059e+37
        %v1398 = vand.u32 %v1310, 2147483648
        %v1399 = vor.u32 1.1754944e-38, %v1398
        %v1400 = vsel %vm1397, %v1399, %v1395
        %v1401 = vmul.f32 1.0, %v1400
        %v1402 = vrcp.pop %v1311
        %v1403 = vmul.f32 %v1311, %v1402
        %v1404 = vsub.f32 1.0, %v1403
        %v1405 = vmul.f32 %v1402, %v1404
        %v1406 = vadd.f32 %v1402, %v1405
        %vm1407 = vweird.f32 %v1311
        %vm1408 = vweird.f32 %v1402
        %vm1409 = vmor %vm1407, %vm1408
        %v1410 = vsel %vm1409, %v1402, %v1406
        %v1411 = vand.u32 2147483647, %v1311
        %vm1412 = vcmp.eq.f32.partialorder %v1411, 8.507059e+37
        %v1413 = vand.u32 %v1311, 2147483648
        %v1414 = vor.u32 1.1754944e-38, %v1413
        %v1415 = vsel %vm1412, %v1414, %v1410
        %v1416 = vmul.f32 1.0, %v1415
        %v1417 = vmul.f32 %v1266, %v1326
        %v1418 = vmul.f32 %v1268, %v1341
        %v1419 = vmul.f32 %v1271, %v1356
        %v1420 = vmul.f32 %v1273, %v1371
        %v1421 = vmul.f32 %v1276, %v1386
        %v1422 = vmul.f32 %v1278, %v1401
        %v1423 = vmul.f32 %v1281, %v1416
        %1424 = vst [vmem:[%s683] sm:$0xff] %v1417
        %1425 = vst [vmem:[%s683 + $0x8] sm:$0xff] %v1418
        %1426 = vst [vmem:[%s683 + $0x10] sm:$0xff] %v1419
        %1427 = vst [vmem:[%s683 + $0x18] sm:$0xff] %v1420
        %1428 = vst [vmem:[%s683 + $0x20] sm:$0xff] %v1421
        %1429 = vst [vmem:[%s683 + $0x28] sm:$0xff] %v1422
        %1430 = vst [vmem:[%s683 + $0x30] sm:$0xff] %v1423
        %v1431 = vpack.c.bf16 %v811, %v811
        %v1432 = vpack.c.bf16 %v1418, %v1417
        %v1433 = vpack.c.bf16 %v1420, %v1419
        %v1434 = vpack.c.bf16 %v1422, %v1421
        %v1435 = vpack.c.bf16 %v1423, %v1423
        %vm1436 = vcmask 457728
        %v1438 = vsel %vm1436, %v1431, 0
        %v1441 = vsel %vm951, %v1435, 0
        %1443 = vmatpush.bf16.msra.mxu0 0
        %1444 = vmatpush.bf16.msra.mxu0 0
        %1445 = vmatpush.bf16.msra.mxu0 0
        %1446 = vmatpush.bf16.msra.mxu0 0
        %1447 = vmatpush.bf16.msra.mxu0 %v1441
        %1448 = vmatpush.bf16.msra.mxu0 %v1434
        %1449 = vmatpush.bf16.msra.mxu0 %v1433
        %1450 = vmatpush.bf16.msra.mxu0 %v1432
        %1451 = vmatmul.bf16.gmra.mxu0 %v1438
        %v1452 = vpop.f32.mrf.mxu0
        %v1453 = vadd.f32 0.0, %v1452
        %v1454 = vpop.f32.mrf.mxu0
        %1455 = vdwg.mxu0
        %v1456 = vsel %vm1436, %v811, 0.0
        %1457 = vadd.xlane.f32.xlu0 %v1456
        %v1458 = vpop.xlane.xlu0 %1457
        %v1459 = vmax.f32 %v1458, 1.0
        %v1460 = vrcp.pop %v1459
        %vm1461 = vcmp.gt.f32.partialorder %v1458, 0.0
        %v1462 = vmul.f32 %v1453, %v1460
        %v1463 = vsel %vm1461, 1, 0
        %vm1464 = vcmp.eq.s32.totalorder %v1463, 1
        %v1465 = vsel %vm1464, %v1462, 0.0
        %v1466 = vld [vmem:[%s11] sm:$0xf]
        %v1467 = vld [vmem:[%s11 + $0x4] sm:$0xf]
        %v1468 = vld [vmem:[%s12] sm:$0x1]
        %v1470 = vperm.slane %v1468, 0
        %v1474 = vunpack.c.l.b16 %v1466
        %v1475 = vunpack.c.l.b16 %v1467
        %v1476 = vpack.c.b16 %v1475, %v1474
        %1478 = vmatpush.bf16.msra.mxu0 0
        %1479 = vmatpush.bf16.msra.mxu0 0
        %1480 = vmatpush.bf16.msra.mxu0 0
        %1481 = vmatpush.bf16.msra.mxu0 0
        %1482 = vmatpush.bf16.msra.mxu0 0
        %1483 = vmatpush.bf16.msra.mxu0 0
        %1484 = vmatpush.bf16.msra.mxu0 0
        %1485 = vmatpush.bf16.msra.mxu0 %v1476
        %1486 = vmatmul.bf16.gmra.mxu0 %v823
        %v1487 = vpop.f32.mrf.mxu0
        %v1488 = vadd.f32 %v1470, %v1487
        %v1489 = vpop.f32.mrf.mxu0
        %1490 = vdwg.mxu0
        %v1491 = vadd.f32 %v1488, %v1465
        %v1492 = vpack.c.bf16 %v1491, %v1491
        %v1493 = vld [vmem:[#allocation8] sm:$0xf]
        %v1494 = vld [vmem:[#allocation8 + $0x4] sm:$0xf]
        %v1495 = vld [vmem:[#allocation8 + $0x8] sm:$0xf]
        %v1496 = vld [vmem:[#allocation8 + $0xc] sm:$0xf]
        %v1497 = vld [vmem:[#allocation8 + $0x10] sm:$0xf]
        %v1498 = vld [vmem:[#allocation8 + $0x14] sm:$0xf]
        %v1499 = vld [vmem:[#allocation8 + $0x18] sm:$0xf]
        %v1500 = vld [vmem:[#allocation8 + $0x1c] sm:$0xf]
        %v1501 = vld [vmem:[#allocation8 + $0x20] sm:$0xf]
        %v1502 = vld [vmem:[#allocation8 + $0x24] sm:$0xf]
        %v1503 = vld [vmem:[#allocation8 + $0x28] sm:$0xf]
        %v1504 = vld [vmem:[#allocation8 + $0x2c] sm:$0xf]
        %v1505 = vld [vmem:[#allocation8 + $0x30] sm:$0xf]
        %v1506 = vld [vmem:[#allocation8 + $0x34] sm:$0xf]
        %v1507 = vld [vmem:[#allocation8 + $0x38] sm:$0xf]
        %v1508 = vld [vmem:[#allocation8 + $0x3c] sm:$0xf]
        %v1509 = vld [vmem:[%s14] sm:$0x1]
        %v1511 = vperm.slane %v1509, 0
        %v1529 = vunpack.c.l.b16 %v1493
        %v1530 = vunpack.c.l.b16 %v1494
        %v1531 = vunpack.c.l.b16 %v1495
        %v1532 = vunpack.c.l.b16 %v1496
        %v1533 = vunpack.c.l.b16 %v1497
        %v1534 = vunpack.c.l.b16 %v1498
        %v1535 = vunpack.c.l.b16 %v1499
        %v1536 = vunpack.c.l.b16 %v1500
        %v1537 = vunpack.c.l.b16 %v1501
        %v1538 = vunpack.c.l.b16 %v1502
        %v1539 = vunpack.c.l.b16 %v1503
        %v1540 = vunpack.c.l.b16 %v1504
        %v1541 = vunpack.c.l.b16 %v1505
        %v1542 = vunpack.c.l.b16 %v1506
        %v1543 = vunpack.c.l.b16 %v1507
        %v1544 = vunpack.c.l.b16 %v1508
        %v1545 = vpack.c.b16 %v1530, %v1529
        %v1546 = vpack.c.b16 %v1532, %v1531
        %v1547 = vpack.c.b16 %v1534, %v1533
        %v1548 = vpack.c.b16 %v1536, %v1535
        %v1549 = vpack.c.b16 %v1538, %v1537
        %v1550 = vpack.c.b16 %v1540, %v1539
        %v1551 = vpack.c.b16 %v1542, %v1541
        %v1552 = vpack.c.b16 %v1544, %v1543
        %1561 = vmatpush.bf16.msra.mxu0 %v1552
        %1562 = vmatpush.bf16.msra.mxu0 %v1551
        %1563 = vmatpush.bf16.msra.mxu0 %v1550
        %1564 = vmatpush.bf16.msra.mxu0 %v1549
        %1565 = vmatpush.bf16.msra.mxu0 %v1548
        %1566 = vmatpush.bf16.msra.mxu0 %v1547
        %1567 = vmatpush.bf16.msra.mxu0 %v1546
        %1568 = vmatpush.bf16.msra.mxu0 %v1545
        %1569 = vmatmul.bf16.gmra.mxu0 %v1492
        %v1570 = vpop.f32.mrf.mxu0
        %v1571 = vadd.f32 %v1511, %v1570
        %v1572 = vpop.f32.mrf.mxu0
        %1573 = vdwg.mxu0
        %v1574 = vxor.u32 %v1571, 2147483648
        %v1575 = vmul.f32 %v1574, 1.442695
        %v1576 = vpow.pop %v1575
        %v1577 = vadd.f32 %v1576, 1.0
        %v1578 = vrcp.pop %v1577
        %v1579 = vmul.f32 %v1577, %v1578
        %v1580 = vsub.f32 1.0, %v1579
        %v1581 = vmul.f32 %v1578, %v1580
        %v1582 = vadd.f32 %v1578, %v1581
        %vm1583 = vweird.f32 %v1577
        %vm1584 = vweird.f32 %v1578
        %vm1585 = vmor %vm1583, %vm1584
        %v1586 = vsel %vm1585, %v1578, %v1582
        %v1587 = vand.u32 2147483647, %v1577
        %vm1588 = vcmp.eq.f32.partialorder %v1587, 8.507059e+37
        %v1589 = vand.u32 %v1577, 2147483648
        %v1590 = vor.u32 1.1754944e-38, %v1589
        %v1591 = vsel %vm1588, %v1590, %v1586
        %v1592 = vmul.f32 1.0, %v1591
        %v1593 = vmul.f32 %v1571, %v1592
        %v1594 = vpack.c.bf16 %v1593, %v1593
        %v1595 = vld [vmem:[#allocation10] sm:$0xf]
        %v1596 = vld [vmem:[#allocation10 + $0x4] sm:$0xf]
        %v1597 = vld [vmem:[#allocation10 + $0x8] sm:$0xf]
        %v1598 = vld [vmem:[#allocation10 + $0xc] sm:$0xf]
        %v1599 = vld [vmem:[#allocation10 + $0x10] sm:$0xf]
        %v1600 = vld [vmem:[#allocation10 + $0x14] sm:$0xf]
        %v1601 = vld [vmem:[#allocation10 + $0x18] sm:$0xf]
        %v1602 = vld [vmem:[#allocation10 + $0x1c] sm:$0xf]
        %v1603 = vld [vmem:[#allocation10 + $0x20] sm:$0xf]
        %v1604 = vld [vmem:[#allocation10 + $0x24] sm:$0xf]
        %v1605 = vld [vmem:[#allocation10 + $0x28] sm:$0xf]
        %v1606 = vld [vmem:[#allocation10 + $0x2c] sm:$0xf]
        %v1607 = vld [vmem:[#allocation10 + $0x30] sm:$0xf]
        %v1608 = vld [vmem:[#allocation10 + $0x34] sm:$0xf]
        %v1609 = vld [vmem:[#allocation10 + $0x38] sm:$0xf]
        %v1610 = vld [vmem:[#allocation10 + $0x3c] sm:$0xf]
        %v1611 = vld [vmem:[%s16] sm:$0x1]
        %v1613 = vperm.slane %v1611, 0
        %v1631 = vunpack.c.l.b16 %v1595
        %v1632 = vunpack.c.l.b16 %v1596
        %v1633 = vunpack.c.l.b16 %v1597
        %v1634 = vunpack.c.l.b16 %v1598
        %v1635 = vunpack.c.l.b16 %v1599
        %v1636 = vunpack.c.l.b16 %v1600
        %v1637 = vunpack.c.l.b16 %v1601
        %v1638 = vunpack.c.l.b16 %v1602
        %v1639 = vunpack.c.l.b16 %v1603
        %v1640 = vunpack.c.l.b16 %v1604
        %v1641 = vunpack.c.l.b16 %v1605
        %v1642 = vunpack.c.l.b16 %v1606
        %v1643 = vunpack.c.l.b16 %v1607
        %v1644 = vunpack.c.l.b16 %v1608
        %v1645 = vunpack.c.l.b16 %v1609
        %v1646 = vunpack.c.l.b16 %v1610
        %v1647 = vpack.c.b16 %v1632, %v1631
        %v1648 = vpack.c.b16 %v1634, %v1633
        %v1649 = vpack.c.b16 %v1636, %v1635
        %v1650 = vpack.c.b16 %v1638, %v1637
        %v1651 = vpack.c.b16 %v1640, %v1639
        %v1652 = vpack.c.b16 %v1642, %v1641
        %v1653 = vpack.c.b16 %v1644, %v1643
        %v1654 = vpack.c.b16 %v1646, %v1645
        %1663 = vmatpush.bf16.msra.mxu0 %v1654
        %1664 = vmatpush.bf16.msra.mxu0 %v1653
        %1665 = vmatpush.bf16.msra.mxu0 %v1652
        %1666 = vmatpush.bf16.msra.mxu0 %v1651
        %1667 = vmatpush.bf16.msra.mxu0 %v1650
        %1668 = vmatpush.bf16.msra.mxu0 %v1649
        %1669 = vmatpush.bf16.msra.mxu0 %v1648
        %1670 = vmatpush.bf16.msra.mxu0 %v1647
        %1671 = vmatmul.bf16.gmra.mxu0 %v1594
        %v1672 = vpop.f32.mrf.mxu0
        %v1673 = vadd.f32 %v1613, %v1672
        %v1674 = vpop.f32.mrf.mxu0
        %1675 = vdwg.mxu0
        %v1676 = vadd.f32 %v1491, %v1673
        %1677 = vst [vmem:[%s676] sm:$0xff] %v1676
        %s1678 = sand.u32 %s416, 1
        %s1679 = scalar_lea.sflag [#allocation4], %s1678
        %s1680 = sand.u32 %s416, 1
        %s1681 = smul.addr %s1680, 8
        %s1682 = scalar_lea.vmem [#allocation11], %s1681
        %s1683 = sand.u32 %s442, 1
        %s1684 = scalar_lea.sflag [#allocation13], %s1683
        %s1685 = sand.u32 %s442, 1
        %s1686 = smul.addr %s1685, 56
        %s1687 = scalar_lea.vmem [#allocation12], %s1686
        // Predicated region
        $region109: #{tpu_custom_call.1} parent=87 // pred_check
          %p1688 = pneg %p426
        $region110: #{tpu_custom_call.1} parent=87 // pred_check_branch
          %1690 = sbr.rel (%p1688) target = $region112
        $region111: #{tpu_custom_call.1} parent=87 // pred_region
          %1692 = vsyncadd %s1679, 0
          %s1693 = smul.addr %s41, 8
          %s1694 = scalar_lea.hbm %s17, %s1693
          %s1696 = sshll.u32 %s1682, 4
          %s1697 = int_to_ptr.vmem [resolvable:$true] %s1696
          %s1698 = sshll.u32 %s1694, 4
          %s1699 = int_to_ptr.hbm [resolvable:$true] %s1698
          %1701 = dma.vmem_to_hbm [thread:$0]  %s1697, 128, %s1699, %s1679
        $region112: #{tpu_custom_call.1} parent=87 // pred_fallthru
          _
        // Predicated region
        $region113: #{tpu_custom_call.1} parent=87 // pred_check
          %p1702 = pneg %p452
        $region114: #{tpu_custom_call.1} parent=87 // pred_check_branch
          %1704 = sbr.rel (%p1702) target = $region116
        $region115: #{tpu_custom_call.1} parent=87 // pred_region
          %1706 = vsyncadd %s1684, 0
          %s1707 = smul.addr %s41, 7
          %s1708 = smul.addr %s1707, 8
          %s1709 = scalar_lea.hbm %s18, %s1708
          %s1710 = sshll.u32 %s1687, 4
          %s1711 = int_to_ptr.vmem [resolvable:$true] %s1710
          %s1712 = sshll.u32 %s1709, 4
          %s1713 = int_to_ptr.hbm [resolvable:$true] %s1712
          %1718 = dma.vmem_to_hbm [thread:$0]  %s1711, 896, %s1713, %s1684, 128, 128, 8
        $region116: #{tpu_custom_call.1} parent=87 // pred_fallthru
          _
      $region88: #{tpu_custom_call.1} parent=5 // pred_fallthru
        _
      %p1719 = scmp.le.s32.totalorder 2, %s36
      // Predicated region
      $region117: #{tpu_custom_call.1} parent=5 // pred_check
        %p1720 = pneg %p1719
      $region118: #{tpu_custom_call.1} parent=5 // pred_check_branch
        %1722 = sbr.rel (%p1720) target = $region120
      $region119: #{tpu_custom_call.1} parent=5 // pred_region
        %s1723 = ssub.s32 %s36, 2
        // Predicated region
        $region121: #{tpu_custom_call.1} parent=119 // pred_check
          %p1724 = pneg %p432
        $region122: #{tpu_custom_call.1} parent=119 // pred_check_branch
          %1726 = sbr.rel (%p1724) target = $region124
        $region123: #{tpu_custom_call.1} parent=119 // pred_region
          %s1727 = sand.u32 %s417, 1
          %s1728 = scalar_lea.sflag [#allocation4], %s1727
          %s1729 = sand.u32 %s417, 1
          %s1730 = smul.addr %s1729, 8
          %s1731 = scalar_lea.vmem [#allocation11], %s1730
          %1733 = dma.done %s1728, 128
        $region124: #{tpu_custom_call.1} parent=119 // pred_fallthru
          _
        // Predicated region
        $region125: #{tpu_custom_call.1} parent=119 // pred_check
          %p1734 = pneg %p458
        $region126: #{tpu_custom_call.1} parent=119 // pred_check_branch
          %1736 = sbr.rel (%p1734) target = $region128
        $region127: #{tpu_custom_call.1} parent=119 // pred_region
          %s1737 = sand.u32 %s443, 1
          %s1738 = scalar_lea.sflag [#allocation13], %s1737
          %s1739 = sand.u32 %s443, 1
          %s1740 = smul.addr %s1739, 56
          %s1741 = scalar_lea.vmem [#allocation12], %s1740
          %1743 = dma.done %s1738, 896
        $region128: #{tpu_custom_call.1} parent=119 // pred_fallthru
          _
      $region120: #{tpu_custom_call.1} parent=5 // pred_fallthru
        _
    $region6: #{tpu_custom_call.1} parent=1 // loop_footer
      %s40 = sadd.s32 1, %s36
    $region7: #{tpu_custom_call.1} parent=1 // loop_footer_branch
      %35 = sbr.rel target = $region3
    $region8: #{tpu_custom_call.1} parent=1 // loop_exit
      _
    %1744 = vsyncpa [#allocation3], 1
    %s1745 = scalar_lea.sflag [#allocation3], 1
    %1746 = vsyncpa %s1745, 1
    %1747 = vsyncpa [#allocation6], 1
    %1748 = vsyncpa [#allocation9], 1
    %1749 = vsyncpa [#allocation4], 1
    %s1750 = scalar_lea.sflag [#allocation4], 1
    %1751 = vsyncpa %s1750, 1
    %1752 = vsyncpa [#allocation13], 1
    %s1753 = scalar_lea.sflag [#allocation13], 1
    %1754 = vsyncpa %s1753, 1

</llo_original>
